<compile_context>
chip_gen: v7x
topology: tpu7x:2x2x1
jax: 0.10.0
libtpu: 0.0.40
codegen_flags: <defaults>
</compile_context>

<pallas_src>
import functools

import jax
import jax.numpy as jnp
from jax.experimental import pallas as pl
from jax.experimental.pallas import tpu as pltpu


def _sigmoid(v):
    # exp() runs on the EUP.  (pl.reciprocal(..., approx=True) would offload
    # the divide too at ~1e-3 error; kept exact to preserve reference accuracy.)
    return 1.0 / (1.0 + jnp.exp(-v))


def _shift(x, t):
    """Circular lane shift: y[:, k] = x[:, (k + t) % L].

    Equivalent to a lane rotation (pltpu.roll(x, -t, axis=1)); spelled with
    static lane slices + concat so the semantics are unambiguous.
    """
    L = x.shape[-1]
    t = t % L
    if t == 0:
        return x
    return jnp.concatenate([x[:, t:], x[:, :t]], axis=1)


def _conv3x3_flat(xc, xl, xr, w, b, W):
    """One 3x3 conv over a flattened (rows*cols on lanes) window.

    xc : (Cin, S)  window, channels on sublanes, flattened (row, col) on lanes
    xl : xc with source column W-1 zeroed  (feeds the dx==0 taps)
    xr : xc with source column 0   zeroed  (feeds the dx==2 taps)
    w  : (Cout, 9*Cin) folded weights, K ordered as (dy, dx, cin)
    b  : (Cout, 1)
    Returns (Cout, S); output coordinate h corresponds to input row h+1
    ("valid"-style alignment: each conv in the chain shifts up by one row).
    """
    taps = []
    for dy in range(3):
        for dx in range(3):
            src = (xl, xc, xr)[dx]
            taps.append(_shift(src, dy * W + dx - 1))
    patches = jnp.concatenate(taps, axis=0)                      # (9*Cin, S)
    return jnp.dot(w, patches, preferred_element_type=jnp.float32) + b


def _spab1_kernel(xa_ref, xb_ref,
                  w1_ref, b1_ref, w2_ref, b2_ref, w3_ref, b3_ref,
                  out_ref, out1_ref, att_ref,
                  *, C, H, W, TH):
    SV = TH * W            # flat length of the TH output rows of this tile
    S = 2 * SV             # flat length of the working window (2 blocks)
    i = pl.program_id(1)   # H-tile index

    # Working window: H-padded rows [i*TH, i*TH + 2*TH), flattened on lanes.
    xwin = jnp.concatenate([xa_ref[...], xb_ref[...]], axis=1)   # (C, S)

    # Per-lane column / row indices (built from 2-D iota + free-ish reshape so
    # no vector integer div/mod is needed).
    col = jax.lax.broadcasted_iota(jnp.int32, (1, 2 * TH, W), 2).reshape(1, S)
    rowi = jax.lax.broadcasted_iota(jnp.int32, (1, 2 * TH, W), 1).reshape(1, S)
    row = i * TH + rowi                       # row index in H-padded coords

    # Source-side masks reproducing SAME zero padding in W: when a tap is a
    # circular lane shift, the only invalid sources are column W-1 (dx==0
    # taps) and column 0 (dx==2 taps).
    def bordered(v):
        return (v,
                jnp.where(col != W - 1, v, 0.0),   # for dx == 0 taps
                jnp.where(col != 0, v, 0.0))       # for dx == 2 taps

    # --- conv1 (+ SiLU) -----------------------------------------------------
    o1 = _conv3x3_flat(*bordered(xwin), w1_ref[...], b1_ref[...], W)
    # o1 coord h <-> padded row (row + 1); this tile's original rows are
    # coords [2, TH+2)  ->  lane slice at offset 2*W.
    out1_ref[...] = o1[:, 2 * W:2 * W + SV]
    a1 = o1 * _sigmoid(o1)
    # Activations at rows outside the original image must be exactly zero:
    # they act as conv2's zero padding (only bites on the first/last tile).
    a1 = jnp.where((row + 1 >= 3) & (row + 1 < H + 3), a1, 0.0)

    # --- conv2 (+ SiLU) -----------------------------------------------------
    o2 = _conv3x3_flat(*bordered(a1), w2_ref[...], b2_ref[...], W)
    a2 = o2 * _sigmoid(o2)
    a2 = jnp.where((row + 2 >= 3) & (row + 2 < H + 3), a2, 0.0)

    # --- conv3 + attention + residual fusion --------------------------------
    o3 = _conv3x3_flat(*bordered(a2), w3_ref[...], b3_ref[...], W)
    # o3 coord h <-> padded row (row + 3) == this tile's original row h:
    # the stored region starts at lane offset 0 (unmasked, aligned stores).
    att = _sigmoid(o3) - 0.5
    x_res = xwin[:, 3 * W:3 * W + SV]          # this tile's input pixels
    att_v = att[:, :SV]
    att_ref[...] = att_v
    out_ref[...] = (o3[:, :SV] + x_res) * att_v


def spab1_forward(x_nchw, params, *, tile_h=8):
    """SPAB1.forward.

    x_nchw: (N, C, H, W) float32 (PyTorch NCHW layout)
    params: (w1, b1, w2, b2, w3, b3); w*: (C, C, 3, 3) OIHW, b*: (C,)
    Returns (out, out1, sim_att), each (N, C, H, W).
    """
    w1, b1, w2, b2, w3, b3 = params
    N, C, H, W = x_nchw.shape
    TH = tile_h
    assert H % TH == 0 and TH >= 6, "tile_h must divide H and be >= 6 (3-row halo/side)"
    assert (TH * W) % 128 == 0, "tile must be lane aligned: (tile_h * W) % 128 == 0"
    nt = H // TH

    x = x_nchw.astype(jnp.float32)
    # 3 zero halo rows on top, TH-3 on the bottom so every tile's window (two
    # consecutive TH-row blocks) stays in bounds; then flatten (H, W) onto the
    # lane axis (a free, contiguous reshape -- no transpose).
    xp = jnp.pad(x, ((0, 0), (0, 0), (3, TH - 3), (0, 0)))
    xp_flat = xp.reshape(N, C, (H + TH) * W)

    def fold_w(w):
        # (Cout, Cin, 3, 3) -> (Cout, 9*Cin) with K ordered (dy, dx, cin) to
        # match the tap stacking order inside the kernel.
        co, ci = w.shape[0], w.shape[1]
        return jnp.transpose(w, (0, 2, 3, 1)).reshape(co, 9 * ci).astype(jnp.float32)

    def fold_b(b):
        return b.reshape(-1, 1).astype(jnp.float32)

    kernel = functools.partial(_spab1_kernel, C=C, H=H, W=W, TH=TH)

    def blk_io(off):
        return pl.BlockSpec((None, C, TH * W),
                            lambda n, i, off=off: (n, 0, i + off))

    blk_w = pl.BlockSpec((C, 9 * C), lambda n, i: (0, 0))
    blk_b = pl.BlockSpec((C, 1), lambda n, i: (0, 0))
    out_spec = pl.BlockSpec((None, C, TH * W), lambda n, i: (n, 0, i))
    out_sds = jax.ShapeDtypeStruct((N, C, H * W), jnp.float32)

    out, out1, att = pl.pallas_call(
        kernel,
        grid=(N, nt),
        in_specs=[blk_io(0), blk_io(1),          # window = two TH-row blocks
                  blk_w, blk_b, blk_w, blk_b, blk_w, blk_b],
        out_specs=(out_spec, out_spec, out_spec),
        out_shape=(out_sds, out_sds, out_sds),
        compiler_params=pltpu.CompilerParams(
            dimension_semantics=("parallel", "parallel"),   # megacore-friendly
            vmem_limit_bytes=32 * 1024 * 1024),
    )(xp_flat, xp_flat,
      fold_w(w1), fold_b(b1), fold_w(w2), fold_b(b2), fold_w(w3), fold_b(b3))

    unflat = lambda t: t.reshape(N, C, H, W)
    return unflat(out), unflat(out1), unflat(att)


# ---------------- pure-JAX reference (NCHW, matches PyTorch semantics) ------
def _conv_ref(x, w, b):
    y = jax.lax.conv_general_dilated(
        x, w, window_strides=(1, 1), padding="SAME",
        dimension_numbers=("NCHW", "OIHW", "NCHW"))
    return y + b.reshape(1, -1, 1, 1)


def spab1_ref(x, params):
    w1, b1, w2, b2, w3, b3 = params
    out1 = _conv_ref(x, w1, b1)
    a1 = out1 * jax.nn.sigmoid(out1)
    out2 = _conv_ref(a1, w2, b2)
    a2 = out2 * jax.nn.sigmoid(out2)
    out3 = _conv_ref(a2, w3, b3)
    att = jax.nn.sigmoid(out3) - 0.5
    out = (out3 + x) * att
    return out, out1, att


if __name__ == "__main__":
    N, C, H, W = 2, 4, 16, 16          # SPAB1 defaults: in == mid == out
    key = jax.random.PRNGKey(0)
    ks = jax.random.split(key, 7)

    x = jax.random.normal(ks[0], (N, C, H, W), jnp.float32)
    # deterministic synthetic weights for the three Conv3XC.eval_conv layers
    w1 = jax.random.normal(ks[1], (C, C, 3, 3), jnp.float32) * 0.1
    b1 = jax.random.normal(ks[2], (C,), jnp.float32) * 0.01
    w2 = jax.random.normal(ks[3], (C, C, 3, 3), jnp.float32) * 0.1
    b2 = jax.random.normal(ks[4], (C,), jnp.float32) * 0.01
    w3 = jax.random.normal(ks[5], (C, C, 3, 3), jnp.float32) * 0.1
    b3 = jax.random.normal(ks[6], (C,), jnp.float32) * 0.01
    params = (w1, b1, w2, b2, w3, b3)

    out, out1, att = spab1_forward(x, params, tile_h=8)
    jax.block_until_ready((out, out1, att))

    r_out, r_out1, r_att = spab1_ref(x, params)
    assert jnp.allclose(out1, r_out1, atol=1e-3, rtol=1e-3), "out1 mismatch"
    assert jnp.allclose(att, r_att, atol=1e-3, rtol=1e-3), "sim_att mismatch"
    assert jnp.allclose(out, r_out, atol=1e-3, rtol=1e-3), "out mismatch"

    print("KERNEL_OK")
</pallas_src>

<mosaic_0001>
module attributes {stable_mosaic.version = 11 : i64} {
  func.func @_spab1_kernel(%arg0: i32, %arg1: i32, %arg2: memref<1x4x128xf32, #tpu.memory_space<vmem>>, %arg3: memref<1x4x128xf32, #tpu.memory_space<vmem>>, %arg4: memref<4x36xf32, #tpu.memory_space<vmem>>, %arg5: memref<4x1xf32, #tpu.memory_space<vmem>>, %arg6: memref<4x36xf32, #tpu.memory_space<vmem>>, %arg7: memref<4x1xf32, #tpu.memory_space<vmem>>, %arg8: memref<4x36xf32, #tpu.memory_space<vmem>>, %arg9: memref<4x1xf32, #tpu.memory_space<vmem>>, %arg10: memref<1x4x128xf32, #tpu.memory_space<vmem>>, %arg11: memref<1x4x128xf32, #tpu.memory_space<vmem>>, %arg12: memref<1x4x128xf32, #tpu.memory_space<vmem>>) attributes {dimension_semantics = [#tpu.dimension_semantics<parallel>, #tpu.dimension_semantics<parallel>], iteration_bounds = array<i64: 2, 2>, scalar_prefetch = 0 : i64, scratch_operands = 0 : i64, tpu.core_type = #tpu.core_type<tc>, window_params = [{transform_indices = @transform_0, window_bounds = array<i64: 1, 4, 128>}, {transform_indices = @transform_1, window_bounds = array<i64: 1, 4, 128>}, {pipeline_mode = #tpu.pipeline_mode<synchronous>, transform_indices = @transform_2, window_bounds = array<i64: 4, 36>}, {pipeline_mode = #tpu.pipeline_mode<synchronous>, transform_indices = @transform_3, window_bounds = array<i64: 4, 1>}, {pipeline_mode = #tpu.pipeline_mode<synchronous>, transform_indices = @transform_4, window_bounds = array<i64: 4, 36>}, {pipeline_mode = #tpu.pipeline_mode<synchronous>, transform_indices = @transform_5, window_bounds = array<i64: 4, 1>}, {pipeline_mode = #tpu.pipeline_mode<synchronous>, transform_indices = @transform_6, window_bounds = array<i64: 4, 36>}, {pipeline_mode = #tpu.pipeline_mode<synchronous>, transform_indices = @transform_7, window_bounds = array<i64: 4, 1>}, {transform_indices = @transform_8, window_bounds = array<i64: 1, 4, 128>}, {transform_indices = @transform_9, window_bounds = array<i64: 1, 4, 128>}, {transform_indices = @transform_10, window_bounds = array<i64: 1, 4, 128>}]} {
    %c0 = arith.constant 0 : index
    %c0_0 = arith.constant 0 : index
    %c0_1 = arith.constant 0 : index
    %0 = vector.load %arg2[%c0, %c0_0, %c0_1] : memref<1x4x128xf32, #tpu.memory_space<vmem>>, vector<1x4x128xf32>
    %1 = vector.shape_cast %0 : vector<1x4x128xf32> to vector<4x128xf32>
    %c0_2 = arith.constant 0 : index
    %c0_3 = arith.constant 0 : index
    %c0_4 = arith.constant 0 : index
    %2 = vector.load %arg3[%c0_2, %c0_3, %c0_4] : memref<1x4x128xf32, #tpu.memory_space<vmem>>, vector<1x4x128xf32>
    %3 = vector.shape_cast %2 : vector<1x4x128xf32> to vector<4x128xf32>
    %4 = tpu.concatenate %1, %3 in 1 : vector<4x128xf32>, vector<4x128xf32> -> vector<4x256xf32>
    %5 = tpu.iota {dimensions = array<i32: 2>} : vector<1x16x16xi32>
    %6 = vector.shape_cast %5 : vector<1x16x16xi32> to vector<1x256xi32>
    %7 = tpu.iota {dimensions = array<i32: 1>} : vector<1x16x16xi32>
    %8 = vector.shape_cast %7 : vector<1x16x16xi32> to vector<1x256xi32>
    %c8_i32 = arith.constant 8 : i32
    %9 = arith.muli %arg1, %c8_i32 : i32
    %10 = vector.broadcast %9 : i32 to vector<1x256xi32>
    %11 = arith.addi %10, %8 : vector<1x256xi32>
    %c15_i32 = arith.constant 15 : i32
    %12 = vector.broadcast %c15_i32 : i32 to vector<1x256xi32>
    %13 = arith.cmpi ne, %6, %12 : vector<1x256xi32>
    %cst = arith.constant 0.000000e+00 : f32
    %14 = vector.shape_cast %13 : vector<1x256xi1> to vector<1x256xi1>
    %15 = vector.broadcast %14 : vector<1x256xi1> to vector<4x256xi1>
    %16 = vector.broadcast %cst : f32 to vector<4x256xf32>
    %17 = arith.select %15, %4, %16 : vector<4x256xi1>, vector<4x256xf32>
    %c0_i32 = arith.constant 0 : i32
    %18 = vector.broadcast %c0_i32 : i32 to vector<1x256xi32>
    %19 = arith.cmpi ne, %6, %18 : vector<1x256xi32>
    %cst_5 = arith.constant 0.000000e+00 : f32
    %20 = vector.shape_cast %19 : vector<1x256xi1> to vector<1x256xi1>
    %21 = vector.broadcast %20 : vector<1x256xi1> to vector<4x256xi1>
    %22 = vector.broadcast %cst_5 : f32 to vector<4x256xf32>
    %23 = arith.select %21, %4, %22 : vector<4x256xi1>, vector<4x256xf32>
    %c0_6 = arith.constant 0 : index
    %c0_7 = arith.constant 0 : index
    %24 = vector.load %arg4[%c0_6, %c0_7] : memref<4x36xf32, #tpu.memory_space<vmem>>, vector<4x36xf32>
    %c0_8 = arith.constant 0 : index
    %c0_9 = arith.constant 0 : index
    %25 = vector.load %arg5[%c0_8, %c0_9] : memref<4x1xf32, #tpu.memory_space<vmem>>, vector<4x1xf32>
    %26 = vector.extract_strided_slice %17 {offsets = [0, 255], sizes = [4, 1], strides = [1, 1]} : vector<4x256xf32> to vector<4x1xf32>
    %27 = vector.extract_strided_slice %17 {offsets = [0, 0], sizes = [4, 255], strides = [1, 1]} : vector<4x256xf32> to vector<4x255xf32>
    %28 = tpu.concatenate %26, %27 in 1 : vector<4x1xf32>, vector<4x255xf32> -> vector<4x256xf32>
    %29 = vector.extract_strided_slice %23 {offsets = [0, 1], sizes = [4, 255], strides = [1, 1]} : vector<4x256xf32> to vector<4x255xf32>
    %30 = vector.extract_strided_slice %23 {offsets = [0, 0], sizes = [4, 1], strides = [1, 1]} : vector<4x256xf32> to vector<4x1xf32>
    %31 = tpu.concatenate %29, %30 in 1 : vector<4x255xf32>, vector<4x1xf32> -> vector<4x256xf32>
    %32 = vector.extract_strided_slice %17 {offsets = [0, 15], sizes = [4, 241], strides = [1, 1]} : vector<4x256xf32> to vector<4x241xf32>
    %33 = vector.extract_strided_slice %17 {offsets = [0, 0], sizes = [4, 15], strides = [1, 1]} : vector<4x256xf32> to vector<4x15xf32>
    %34 = tpu.concatenate %32, %33 in 1 : vector<4x241xf32>, vector<4x15xf32> -> vector<4x256xf32>
    %35 = vector.extract_strided_slice %4 {offsets = [0, 16], sizes = [4, 240], strides = [1, 1]} : vector<4x256xf32> to vector<4x240xf32>
    %36 = vector.extract_strided_slice %4 {offsets = [0, 0], sizes = [4, 16], strides = [1, 1]} : vector<4x256xf32> to vector<4x16xf32>
    %37 = tpu.concatenate %35, %36 in 1 : vector<4x240xf32>, vector<4x16xf32> -> vector<4x256xf32>
    %38 = vector.extract_strided_slice %23 {offsets = [0, 17], sizes = [4, 239], strides = [1, 1]} : vector<4x256xf32> to vector<4x239xf32>
    %39 = vector.extract_strided_slice %23 {offsets = [0, 0], sizes = [4, 17], strides = [1, 1]} : vector<4x256xf32> to vector<4x17xf32>
    %40 = tpu.concatenate %38, %39 in 1 : vector<4x239xf32>, vector<4x17xf32> -> vector<4x256xf32>
    %41 = vector.extract_strided_slice %17 {offsets = [0, 31], sizes = [4, 225], strides = [1, 1]} : vector<4x256xf32> to vector<4x225xf32>
    %42 = vector.extract_strided_slice %17 {offsets = [0, 0], sizes = [4, 31], strides = [1, 1]} : vector<4x256xf32> to vector<4x31xf32>
    %43 = tpu.concatenate %41, %42 in 1 : vector<4x225xf32>, vector<4x31xf32> -> vector<4x256xf32>
    %44 = vector.extract_strided_slice %4 {offsets = [0, 32], sizes = [4, 224], strides = [1, 1]} : vector<4x256xf32> to vector<4x224xf32>
    %45 = vector.extract_strided_slice %4 {offsets = [0, 0], sizes = [4, 32], strides = [1, 1]} : vector<4x256xf32> to vector<4x32xf32>
    %46 = tpu.concatenate %44, %45 in 1 : vector<4x224xf32>, vector<4x32xf32> -> vector<4x256xf32>
    %47 = vector.extract_strided_slice %23 {offsets = [0, 33], sizes = [4, 223], strides = [1, 1]} : vector<4x256xf32> to vector<4x223xf32>
    %48 = vector.extract_strided_slice %23 {offsets = [0, 0], sizes = [4, 33], strides = [1, 1]} : vector<4x256xf32> to vector<4x33xf32>
    %49 = tpu.concatenate %47, %48 in 1 : vector<4x223xf32>, vector<4x33xf32> -> vector<4x256xf32>
    %50 = tpu.concatenate %28, %4, %31, %34, %37, %40, %43, %46, %49 in 0 : vector<4x256xf32>, vector<4x256xf32>, vector<4x256xf32>, vector<4x256xf32>, vector<4x256xf32>, vector<4x256xf32>, vector<4x256xf32>, vector<4x256xf32>, vector<4x256xf32> -> vector<36x256xf32>
    %cst_10 = arith.constant dense<0.000000e+00> : vector<4x256xf32>
    %51 = tpu.matmul %24, %50, %cst_10 {dimension_numbers = #tpu.dot_dimension_numbers<[1], [0], [0], [1], [0, 0, 1, 1], [], []>} : vector<4x36xf32>, vector<36x256xf32>, vector<4x256xf32> -> vector<4x256xf32>
    %52 = vector.broadcast %25 : vector<4x1xf32> to vector<4x256xf32>
    %53 = arith.addf %51, %52 : vector<4x256xf32>
    %54 = vector.extract_strided_slice %53 {offsets = [0, 32], sizes = [4, 128], strides = [1, 1]} : vector<4x256xf32> to vector<4x128xf32>
    %c0_11 = arith.constant 0 : index
    %c0_12 = arith.constant 0 : index
    %c0_13 = arith.constant 0 : index
    %55 = vector.load %arg11[%c0_11, %c0_12, %c0_13] : memref<1x4x128xf32, #tpu.memory_space<vmem>>, vector<1x4x128xf32>
    %56 = vector.shape_cast %55 : vector<1x4x128xf32> to vector<4x128xf32>
    %57 = vector.shape_cast %54 : vector<4x128xf32> to vector<1x4x128xf32>
    tpu.vector_store %arg11[%c0_11, %c0_12, %c0_13], %57 {strides = array<i32>} : memref<1x4x128xf32, #tpu.memory_space<vmem>>, vector<1x4x128xf32>,
    %cst_14 = arith.constant 0.000000e+00 : f32
    %58 = vector.broadcast %cst_14 : f32 to vector<4x256xf32>
    %59 = arith.subf %58, %53 : vector<4x256xf32>
    %60 = math.exp %59 : vector<4x256xf32>
    %cst_15 = arith.constant 1.000000e+00 : f32
    %61 = vector.broadcast %cst_15 : f32 to vector<4x256xf32>
    %62 = arith.addf %61, %60 : vector<4x256xf32>
    %cst_16 = arith.constant 1.000000e+00 : f32
    %63 = vector.broadcast %cst_16 : f32 to vector<4x256xf32>
    %64 = arith.divf %63, %62 : vector<4x256xf32>
    %65 = arith.mulf %53, %64 : vector<4x256xf32>
    %c1_i32 = arith.constant 1 : i32
    %66 = vector.broadcast %c1_i32 : i32 to vector<1x256xi32>
    %67 = arith.addi %11, %66 : vector<1x256xi32>
    %c3_i32 = arith.constant 3 : i32
    %68 = vector.broadcast %c3_i32 : i32 to vector<1x256xi32>
    %69 = arith.cmpi sge, %67, %68 : vector<1x256xi32>
    %c1_i32_17 = arith.constant 1 : i32
    %70 = vector.broadcast %c1_i32_17 : i32 to vector<1x256xi32>
    %71 = arith.addi %11, %70 : vector<1x256xi32>
    %c19_i32 = arith.constant 19 : i32
    %72 = vector.broadcast %c19_i32 : i32 to vector<1x256xi32>
    %73 = arith.cmpi slt, %71, %72 : vector<1x256xi32>
    %74 = arith.andi %69, %73 : vector<1x256xi1>
    %cst_18 = arith.constant 0.000000e+00 : f32
    %75 = vector.shape_cast %74 : vector<1x256xi1> to vector<1x256xi1>
    %76 = vector.broadcast %75 : vector<1x256xi1> to vector<4x256xi1>
    %77 = vector.broadcast %cst_18 : f32 to vector<4x256xf32>
    %78 = arith.select %76, %65, %77 : vector<4x256xi1>, vector<4x256xf32>
    %c15_i32_19 = arith.constant 15 : i32
    %79 = vector.broadcast %c15_i32_19 : i32 to vector<1x256xi32>
    %80 = arith.cmpi ne, %6, %79 : vector<1x256xi32>
    %cst_20 = arith.constant 0.000000e+00 : f32
    %81 = vector.shape_cast %80 : vector<1x256xi1> to vector<1x256xi1>
    %82 = vector.broadcast %81 : vector<1x256xi1> to vector<4x256xi1>
    %83 = vector.broadcast %cst_20 : f32 to vector<4x256xf32>
    %84 = arith.select %82, %78, %83 : vector<4x256xi1>, vector<4x256xf32>
    %c0_i32_21 = arith.constant 0 : i32
    %85 = vector.broadcast %c0_i32_21 : i32 to vector<1x256xi32>
    %86 = arith.cmpi ne, %6, %85 : vector<1x256xi32>
    %cst_22 = arith.constant 0.000000e+00 : f32
    %87 = vector.shape_cast %86 : vector<1x256xi1> to vector<1x256xi1>
    %88 = vector.broadcast %87 : vector<1x256xi1> to vector<4x256xi1>
    %89 = vector.broadcast %cst_22 : f32 to vector<4x256xf32>
    %90 = arith.select %88, %78, %89 : vector<4x256xi1>, vector<4x256xf32>
    %c0_23 = arith.constant 0 : index
    %c0_24 = arith.constant 0 : index
    %91 = vector.load %arg6[%c0_23, %c0_24] : memref<4x36xf32, #tpu.memory_space<vmem>>, vector<4x36xf32>
    %c0_25 = arith.constant 0 : index
    %c0_26 = arith.constant 0 : index
    %92 = vector.load %arg7[%c0_25, %c0_26] : memref<4x1xf32, #tpu.memory_space<vmem>>, vector<4x1xf32>
    %93 = vector.extract_strided_slice %84 {offsets = [0, 255], sizes = [4, 1], strides = [1, 1]} : vector<4x256xf32> to vector<4x1xf32>
    %94 = vector.extract_strided_slice %84 {offsets = [0, 0], sizes = [4, 255], strides = [1, 1]} : vector<4x256xf32> to vector<4x255xf32>
    %95 = tpu.concatenate %93, %94 in 1 : vector<4x1xf32>, vector<4x255xf32> -> vector<4x256xf32>
    %96 = vector.extract_strided_slice %90 {offsets = [0, 1], sizes = [4, 255], strides = [1, 1]} : vector<4x256xf32> to vector<4x255xf32>
    %97 = vector.extract_strided_slice %90 {offsets = [0, 0], sizes = [4, 1], strides = [1, 1]} : vector<4x256xf32> to vector<4x1xf32>
    %98 = tpu.concatenate %96, %97 in 1 : vector<4x255xf32>, vector<4x1xf32> -> vector<4x256xf32>
    %99 = vector.extract_strided_slice %84 {offsets = [0, 15], sizes = [4, 241], strides = [1, 1]} : vector<4x256xf32> to vector<4x241xf32>
    %100 = vector.extract_strided_slice %84 {offsets = [0, 0], sizes = [4, 15], strides = [1, 1]} : vector<4x256xf32> to vector<4x15xf32>
    %101 = tpu.concatenate %99, %100 in 1 : vector<4x241xf32>, vector<4x15xf32> -> vector<4x256xf32>
    %102 = vector.extract_strided_slice %78 {offsets = [0, 16], sizes = [4, 240], strides = [1, 1]} : vector<4x256xf32> to vector<4x240xf32>
    %103 = vector.extract_strided_slice %78 {offsets = [0, 0], sizes = [4, 16], strides = [1, 1]} : vector<4x256xf32> to vector<4x16xf32>
    %104 = tpu.concatenate %102, %103 in 1 : vector<4x240xf32>, vector<4x16xf32> -> vector<4x256xf32>
    %105 = vector.extract_strided_slice %90 {offsets = [0, 17], sizes = [4, 239], strides = [1, 1]} : vector<4x256xf32> to vector<4x239xf32>
    %106 = vector.extract_strided_slice %90 {offsets = [0, 0], sizes = [4, 17], strides = [1, 1]} : vector<4x256xf32> to vector<4x17xf32>
    %107 = tpu.concatenate %105, %106 in 1 : vector<4x239xf32>, vector<4x17xf32> -> vector<4x256xf32>
    %108 = vector.extract_strided_slice %84 {offsets = [0, 31], sizes = [4, 225], strides = [1, 1]} : vector<4x256xf32> to vector<4x225xf32>
    %109 = vector.extract_strided_slice %84 {offsets = [0, 0], sizes = [4, 31], strides = [1, 1]} : vector<4x256xf32> to vector<4x31xf32>
    %110 = tpu.concatenate %108, %109 in 1 : vector<4x225xf32>, vector<4x31xf32> -> vector<4x256xf32>
    %111 = vector.extract_strided_slice %78 {offsets = [0, 32], sizes = [4, 224], strides = [1, 1]} : vector<4x256xf32> to vector<4x224xf32>
    %112 = vector.extract_strided_slice %78 {offsets = [0, 0], sizes = [4, 32], strides = [1, 1]} : vector<4x256xf32> to vector<4x32xf32>
    %113 = tpu.concatenate %111, %112 in 1 : vector<4x224xf32>, vector<4x32xf32> -> vector<4x256xf32>
    %114 = vector.extract_strided_slice %90 {offsets = [0, 33], sizes = [4, 223], strides = [1, 1]} : vector<4x256xf32> to vector<4x223xf32>
    %115 = vector.extract_strided_slice %90 {offsets = [0, 0], sizes = [4, 33], strides = [1, 1]} : vector<4x256xf32> to vector<4x33xf32>
    %116 = tpu.concatenate %114, %115 in 1 : vector<4x223xf32>, vector<4x33xf32> -> vector<4x256xf32>
    %117 = tpu.concatenate %95, %78, %98, %101, %104, %107, %110, %113, %116 in 0 : vector<4x256xf32>, vector<4x256xf32>, vector<4x256xf32>, vector<4x256xf32>, vector<4x256xf32>, vector<4x256xf32>, vector<4x256xf32>, vector<4x256xf32>, vector<4x256xf32> -> vector<36x256xf32>
    %cst_27 = arith.constant dense<0.000000e+00> : vector<4x256xf32>
    %118 = tpu.matmul %91, %117, %cst_27 {dimension_numbers = #tpu.dot_dimension_numbers<[1], [0], [0], [1], [0, 0, 1, 1], [], []>} : vector<4x36xf32>, vector<36x256xf32>, vector<4x256xf32> -> vector<4x256xf32>
    %119 = vector.broadcast %92 : vector<4x1xf32> to vector<4x256xf32>
    %120 = arith.addf %118, %119 : vector<4x256xf32>
    %cst_28 = arith.constant 0.000000e+00 : f32
    %121 = vector.broadcast %cst_28 : f32 to vector<4x256xf32>
    %122 = arith.subf %121, %120 : vector<4x256xf32>
    %123 = math.exp %122 : vector<4x256xf32>
    %cst_29 = arith.constant 1.000000e+00 : f32
    %124 = vector.broadcast %cst_29 : f32 to vector<4x256xf32>
    %125 = arith.addf %124, %123 : vector<4x256xf32>
    %cst_30 = arith.constant 1.000000e+00 : f32
    %126 = vector.broadcast %cst_30 : f32 to vector<4x256xf32>
    %127 = arith.divf %126, %125 : vector<4x256xf32>
    %128 = arith.mulf %120, %127 : vector<4x256xf32>
    %c2_i32 = arith.constant 2 : i32
    %129 = vector.broadcast %c2_i32 : i32 to vector<1x256xi32>
    %130 = arith.addi %11, %129 : vector<1x256xi32>
    %c3_i32_31 = arith.constant 3 : i32
    %131 = vector.broadcast %c3_i32_31 : i32 to vector<1x256xi32>
    %132 = arith.cmpi sge, %130, %131 : vector<1x256xi32>
    %c2_i32_32 = arith.constant 2 : i32
    %133 = vector.broadcast %c2_i32_32 : i32 to vector<1x256xi32>
    %134 = arith.addi %11, %133 : vector<1x256xi32>
    %c19_i32_33 = arith.constant 19 : i32
    %135 = vector.broadcast %c19_i32_33 : i32 to vector<1x256xi32>
    %136 = arith.cmpi slt, %134, %135 : vector<1x256xi32>
    %137 = arith.andi %132, %136 : vector<1x256xi1>
    %cst_34 = arith.constant 0.000000e+00 : f32
    %138 = vector.shape_cast %137 : vector<1x256xi1> to vector<1x256xi1>
    %139 = vector.broadcast %138 : vector<1x256xi1> to vector<4x256xi1>
    %140 = vector.broadcast %cst_34 : f32 to vector<4x256xf32>
    %141 = arith.select %139, %128, %140 : vector<4x256xi1>, vector<4x256xf32>
    %c15_i32_35 = arith.constant 15 : i32
    %142 = vector.broadcast %c15_i32_35 : i32 to vector<1x256xi32>
    %143 = arith.cmpi ne, %6, %142 : vector<1x256xi32>
    %cst_36 = arith.constant 0.000000e+00 : f32
    %144 = vector.shape_cast %143 : vector<1x256xi1> to vector<1x256xi1>
    %145 = vector.broadcast %144 : vector<1x256xi1> to vector<4x256xi1>
    %146 = vector.broadcast %cst_36 : f32 to vector<4x256xf32>
    %147 = arith.select %145, %141, %146 : vector<4x256xi1>, vector<4x256xf32>
    %c0_i32_37 = arith.constant 0 : i32
    %148 = vector.broadcast %c0_i32_37 : i32 to vector<1x256xi32>
    %149 = arith.cmpi ne, %6, %148 : vector<1x256xi32>
    %cst_38 = arith.constant 0.000000e+00 : f32
    %150 = vector.shape_cast %149 : vector<1x256xi1> to vector<1x256xi1>
    %151 = vector.broadcast %150 : vector<1x256xi1> to vector<4x256xi1>
    %152 = vector.broadcast %cst_38 : f32 to vector<4x256xf32>
    %153 = arith.select %151, %141, %152 : vector<4x256xi1>, vector<4x256xf32>
    %c0_39 = arith.constant 0 : index
    %c0_40 = arith.constant 0 : index
    %154 = vector.load %arg8[%c0_39, %c0_40] : memref<4x36xf32, #tpu.memory_space<vmem>>, vector<4x36xf32>
    %c0_41 = arith.constant 0 : index
    %c0_42 = arith.constant 0 : index
    %155 = vector.load %arg9[%c0_41, %c0_42] : memref<4x1xf32, #tpu.memory_space<vmem>>, vector<4x1xf32>
    %156 = vector.extract_strided_slice %147 {offsets = [0, 255], sizes = [4, 1], strides = [1, 1]} : vector<4x256xf32> to vector<4x1xf32>
    %157 = vector.extract_strided_slice %147 {offsets = [0, 0], sizes = [4, 255], strides = [1, 1]} : vector<4x256xf32> to vector<4x255xf32>
    %158 = tpu.concatenate %156, %157 in 1 : vector<4x1xf32>, vector<4x255xf32> -> vector<4x256xf32>
    %159 = vector.extract_strided_slice %153 {offsets = [0, 1], sizes = [4, 255], strides = [1, 1]} : vector<4x256xf32> to vector<4x255xf32>
    %160 = vector.extract_strided_slice %153 {offsets = [0, 0], sizes = [4, 1], strides = [1, 1]} : vector<4x256xf32> to vector<4x1xf32>
    %161 = tpu.concatenate %159, %160 in 1 : vector<4x255xf32>, vector<4x1xf32> -> vector<4x256xf32>
    %162 = vector.extract_strided_slice %147 {offsets = [0, 15], sizes = [4, 241], strides = [1, 1]} : vector<4x256xf32> to vector<4x241xf32>
    %163 = vector.extract_strided_slice %147 {offsets = [0, 0], sizes = [4, 15], strides = [1, 1]} : vector<4x256xf32> to vector<4x15xf32>
    %164 = tpu.concatenate %162, %163 in 1 : vector<4x241xf32>, vector<4x15xf32> -> vector<4x256xf32>
    %165 = vector.extract_strided_slice %141 {offsets = [0, 16], sizes = [4, 240], strides = [1, 1]} : vector<4x256xf32> to vector<4x240xf32>
    %166 = vector.extract_strided_slice %141 {offsets = [0, 0], sizes = [4, 16], strides = [1, 1]} : vector<4x256xf32> to vector<4x16xf32>
    %167 = tpu.concatenate %165, %166 in 1 : vector<4x240xf32>, vector<4x16xf32> -> vector<4x256xf32>
    %168 = vector.extract_strided_slice %153 {offsets = [0, 17], sizes = [4, 239], strides = [1, 1]} : vector<4x256xf32> to vector<4x239xf32>
    %169 = vector.extract_strided_slice %153 {offsets = [0, 0], sizes = [4, 17], strides = [1, 1]} : vector<4x256xf32> to vector<4x17xf32>
    %170 = tpu.concatenate %168, %169 in 1 : vector<4x239xf32>, vector<4x17xf32> -> vector<4x256xf32>
    %171 = vector.extract_strided_slice %147 {offsets = [0, 31], sizes = [4, 225], strides = [1, 1]} : vector<4x256xf32> to vector<4x225xf32>
    %172 = vector.extract_strided_slice %147 {offsets = [0, 0], sizes = [4, 31], strides = [1, 1]} : vector<4x256xf32> to vector<4x31xf32>
    %173 = tpu.concatenate %171, %172 in 1 : vector<4x225xf32>, vector<4x31xf32> -> vector<4x256xf32>
    %174 = vector.extract_strided_slice %141 {offsets = [0, 32], sizes = [4, 224], strides = [1, 1]} : vector<4x256xf32> to vector<4x224xf32>
    %175 = vector.extract_strided_slice %141 {offsets = [0, 0], sizes = [4, 32], strides = [1, 1]} : vector<4x256xf32> to vector<4x32xf32>
    %176 = tpu.concatenate %174, %175 in 1 : vector<4x224xf32>, vector<4x32xf32> -> vector<4x256xf32>
    %177 = vector.extract_strided_slice %153 {offsets = [0, 33], sizes = [4, 223], strides = [1, 1]} : vector<4x256xf32> to vector<4x223xf32>
    %178 = vector.extract_strided_slice %153 {offsets = [0, 0], sizes = [4, 33], strides = [1, 1]} : vector<4x256xf32> to vector<4x33xf32>
    %179 = tpu.concatenate %177, %178 in 1 : vector<4x223xf32>, vector<4x33xf32> -> vector<4x256xf32>
    %180 = tpu.concatenate %158, %141, %161, %164, %167, %170, %173, %176, %179 in 0 : vector<4x256xf32>, vector<4x256xf32>, vector<4x256xf32>, vector<4x256xf32>, vector<4x256xf32>, vector<4x256xf32>, vector<4x256xf32>, vector<4x256xf32>, vector<4x256xf32> -> vector<36x256xf32>
    %cst_43 = arith.constant dense<0.000000e+00> : vector<4x256xf32>
    %181 = tpu.matmul %154, %180, %cst_43 {dimension_numbers = #tpu.dot_dimension_numbers<[1], [0], [0], [1], [0, 0, 1, 1], [], []>} : vector<4x36xf32>, vector<36x256xf32>, vector<4x256xf32> -> vector<4x256xf32>
    %182 = vector.broadcast %155 : vector<4x1xf32> to vector<4x256xf32>
    %183 = arith.addf %181, %182 : vector<4x256xf32>
    %cst_44 = arith.constant 0.000000e+00 : f32
    %184 = vector.broadcast %cst_44 : f32 to vector<4x256xf32>
    %185 = arith.subf %184, %183 : vector<4x256xf32>
    %186 = math.exp %185 : vector<4x256xf32>
    %cst_45 = arith.constant 1.000000e+00 : f32
    %187 = vector.broadcast %cst_45 : f32 to vector<4x256xf32>
    %188 = arith.addf %187, %186 : vector<4x256xf32>
    %cst_46 = arith.constant 1.000000e+00 : f32
    %189 = vector.broadcast %cst_46 : f32 to vector<4x256xf32>
    %190 = arith.divf %189, %188 : vector<4x256xf32>
    %cst_47 = arith.constant 5.000000e-01 : f32
    %191 = vector.broadcast %cst_47 : f32 to vector<4x256xf32>
    %192 = arith.subf %190, %191 : vector<4x256xf32>
    %193 = vector.extract_strided_slice %4 {offsets = [0, 48], sizes = [4, 128], strides = [1, 1]} : vector<4x256xf32> to vector<4x128xf32>
    %194 = vector.extract_strided_slice %192 {offsets = [0, 0], sizes = [4, 128], strides = [1, 1]} : vector<4x256xf32> to vector<4x128xf32>
    %c0_48 = arith.constant 0 : index
    %c0_49 = arith.constant 0 : index
    %c0_50 = arith.constant 0 : index
    %195 = vector.load %arg12[%c0_48, %c0_49, %c0_50] : memref<1x4x128xf32, #tpu.memory_space<vmem>>, vector<1x4x128xf32>
    %196 = vector.shape_cast %195 : vector<1x4x128xf32> to vector<4x128xf32>
    %197 = vector.shape_cast %194 : vector<4x128xf32> to vector<1x4x128xf32>
    tpu.vector_store %arg12[%c0_48, %c0_49, %c0_50], %197 {strides = array<i32>} : memref<1x4x128xf32, #tpu.memory_space<vmem>>, vector<1x4x128xf32>,
    %198 = vector.extract_strided_slice %183 {offsets = [0, 0], sizes = [4, 128], strides = [1, 1]} : vector<4x256xf32> to vector<4x128xf32>
    %199 = arith.addf %198, %193 : vector<4x128xf32>
    %200 = arith.mulf %199, %194 : vector<4x128xf32>
    %c0_51 = arith.constant 0 : index
    %c0_52 = arith.constant 0 : index
    %c0_53 = arith.constant 0 : index
    %201 = vector.load %arg10[%c0_51, %c0_52, %c0_53] : memref<1x4x128xf32, #tpu.memory_space<vmem>>, vector<1x4x128xf32>
    %202 = vector.shape_cast %201 : vector<1x4x128xf32> to vector<4x128xf32>
    %203 = vector.shape_cast %200 : vector<4x128xf32> to vector<1x4x128xf32>
    tpu.vector_store %arg10[%c0_51, %c0_52, %c0_53], %203 {strides = array<i32>} : memref<1x4x128xf32, #tpu.memory_space<vmem>>, vector<1x4x128xf32>,
    return
  }
  func.func @transform_0(%arg0: i32, %arg1: i32) -> (i32, i32, i32) {
    %c0_i32 = arith.constant 0 : i32
    %0 = arith.addi %arg1, %c0_i32 : i32
    %c0_i32_0 = arith.constant 0 : i32
    %c0_i32_1 = arith.constant 0 : i32
    return %arg0, %c0_i32_0, %0 : i32, i32, i32
  }
  func.func @transform_1(%arg0: i32, %arg1: i32) -> (i32, i32, i32) {
    %c1_i32 = arith.constant 1 : i32
    %0 = arith.addi %arg1, %c1_i32 : i32
    %c0_i32 = arith.constant 0 : i32
    %c0_i32_0 = arith.constant 0 : i32
    return %arg0, %c0_i32, %0 : i32, i32, i32
  }
  func.func @transform_2(%arg0: i32, %arg1: i32) -> (i32, i32) {
    %c0_i32 = arith.constant 0 : i32
    %c0_i32_0 = arith.constant 0 : i32
    %c0_i32_1 = arith.constant 0 : i32
    return %c0_i32, %c0_i32_0 : i32, i32
  }
  func.func @transform_3(%arg0: i32, %arg1: i32) -> (i32, i32) {
    %c0_i32 = arith.constant 0 : i32
    %c0_i32_0 = arith.constant 0 : i32
    %c0_i32_1 = arith.constant 0 : i32
    return %c0_i32, %c0_i32_0 : i32, i32
  }
  func.func @transform_4(%arg0: i32, %arg1: i32) -> (i32, i32) {
    %c0_i32 = arith.constant 0 : i32
    %c0_i32_0 = arith.constant 0 : i32
    %c0_i32_1 = arith.constant 0 : i32
    return %c0_i32, %c0_i32_0 : i32, i32
  }
  func.func @transform_5(%arg0: i32, %arg1: i32) -> (i32, i32) {
    %c0_i32 = arith.constant 0 : i32
    %c0_i32_0 = arith.constant 0 : i32
    %c0_i32_1 = arith.constant 0 : i32
    return %c0_i32, %c0_i32_0 : i32, i32
  }
  func.func @transform_6(%arg0: i32, %arg1: i32) -> (i32, i32) {
    %c0_i32 = arith.constant 0 : i32
    %c0_i32_0 = arith.constant 0 : i32
    %c0_i32_1 = arith.constant 0 : i32
    return %c0_i32, %c0_i32_0 : i32, i32
  }
  func.func @transform_7(%arg0: i32, %arg1: i32) -> (i32, i32) {
    %c0_i32 = arith.constant 0 : i32
    %c0_i32_0 = arith.constant 0 : i32
    %c0_i32_1 = arith.constant 0 : i32
    return %c0_i32, %c0_i32_0 : i32, i32
  }
  func.func @transform_8(%arg0: i32, %arg1: i32) -> (i32, i32, i32) {
    %c0_i32 = arith.constant 0 : i32
    %c0_i32_0 = arith.constant 0 : i32
    return %arg0, %c0_i32, %arg1 : i32, i32, i32
  }
  func.func @transform_9(%arg0: i32, %arg1: i32) -> (i32, i32, i32) {
    %c0_i32 = arith.constant 0 : i32
    %c0_i32_0 = arith.constant 0 : i32
    return %arg0, %c0_i32, %arg1 : i32, i32, i32
  }
  func.func @transform_10(%arg0: i32, %arg1: i32) -> (i32, i32, i32) {
    %c0_i32 = arith.constant 0 : i32
    %c0_i32_0 = arith.constant 0 : i32
    return %arg0, %c0_i32, %arg1 : i32, i32, i32
  }
}

</mosaic_0001>

<llo_original>
// kernel: tpu_custom_call.1
$region0: #{tpu_custom_call.1}
  #allocation0 [shape = 'u32[]', space=smem, size = 0x4, offset = 0x4, fixed_abs, tag = 'smem constant byte address 0x4 - core index']
  #allocation1 [shape = 'u32[144,128]{1,0:T(1,128)}', space=vmem, size = 0x12000, scoped, tag = 'internal scratch']
  %s0 = inlined_call_operand.hbm [shape: f32[2,4,384], index: 0, kind: input, shape index: {}]
  %s1 = inlined_call_operand.hbm [shape: f32[2,4,384], index: 1, kind: input, shape index: {}]
  %s2 = inlined_call_operand.vmem [shape: f32[4,36], index: 2, kind: input, shape index: {}]
  %s3 = inlined_call_operand.vmem [shape: f32[4,1], index: 3, kind: input, shape index: {}]
  %s4 = inlined_call_operand.vmem [shape: f32[4,36], index: 4, kind: input, shape index: {}]
  %s5 = inlined_call_operand.vmem [shape: f32[4,1], index: 5, kind: input, shape index: {}]
  %s6 = inlined_call_operand.vmem [shape: f32[4,36], index: 6, kind: input, shape index: {}]
  %s7 = inlined_call_operand.vmem [shape: f32[4,1], index: 7, kind: input, shape index: {}]
  %s8 = inlined_call_operand.hbm [shape: f32[2,4,256], index: 8, kind: output, shape index: {0}]
  %s9 = inlined_call_operand.hbm [shape: f32[2,4,256], index: 9, kind: output, shape index: {1}]
  %s10 = inlined_call_operand.hbm [shape: f32[2,4,256], index: 10, kind: output, shape index: {2}]
  %11 = xla_tuple %s8, %s9, %s10
  %s12 = sld [smem:[#allocation0]]
  $region89: #{tpu_custom_call.1} parent=0
    _
  %s14 = ssub.s32 1, %s12
  %s15 = scalar_select 0, %s14, %s12
  $region1: #{tpu_custom_call.1} parent=0
    #allocation2 [shape = 'u8[4096]{0}', space=vmem, size = 0x1000, scoped, tag = 'input window, operand 0']
    #allocation3 [shape = 's32[2]{0}', space=sflag, size = 0x8, scoped, tag = 'scoped memory for tpu_custom_call.1']
    #allocation4 [shape = 's32[2]{0}', space=sflag, size = 0x8, scoped, tag = 'scoped memory for tpu_custom_call.1']
    #allocation5 [shape = 'u8[4096]{0}', space=vmem, size = 0x1000, scoped, tag = 'input window, operand 1']
    #allocation6 [shape = 's32[2]{0}', space=sflag, size = 0x8, scoped, tag = 'scoped memory for tpu_custom_call.1']
    #allocation7 [shape = 'u8[4096]{0}', space=vmem, size = 0x1000, scoped, tag = 'output window, operand 0']
    #allocation8 [shape = 'u8[4096]{0}', space=vmem, size = 0x1000, scoped, tag = 'output window, operand 1']
    #allocation9 [shape = 's32[2]{0}', space=sflag, size = 0x8, scoped, tag = 'scoped memory for tpu_custom_call.1']
    #allocation10 [shape = 'u8[4096]{0}', space=vmem, size = 0x1000, scoped, tag = 'output window, operand 2']
    %16 = vsyncpa [#allocation3], 0
    %s17 = scalar_lea.sflag [#allocation3], 1
    %18 = vsyncpa %s17, 0
    %19 = vsyncpa [#allocation6], 0
    %s20 = scalar_lea.sflag [#allocation6], 1
    %21 = vsyncpa %s20, 0
    %22 = vsyncpa [#allocation4], 0
    %s23 = scalar_lea.sflag [#allocation4], 1
    %24 = vsyncpa %s23, 0
    %25 = vsyncpa [#allocation9], 0
    %s26 = scalar_lea.sflag [#allocation9], 1
    %27 = vsyncpa %s26, 0
    loop: start=0, step=1, limit=6
    $region2: #{tpu_custom_call.1} parent=1 // loop_pre_header
      _
    $region3: #{tpu_custom_call.1} parent=1 // loop_header
      %s29 = sphi 0, %s33
      %p30 = scmp.ge.s32.totalorder %s29, 6
      %s36 = sphi 0, %s48
      %s37 = sphi 0, %s44
      %s38 = sphi 0, %s36
      %s39 = sphi 0, %s37
      %s40 = sphi 0, %s38
      %s41 = sphi 0, %s39
      %s53 = sphi 0, %s55
      %s56 = sphi 0, %s53
      %s57 = sphi 0, %s56
      %s73 = sphi 0, %s57
      %s83 = sphi 0, %s85
      %s86 = sphi 0, %s83
      %s87 = sphi 0, %s86
      %s103 = sphi 0, %s87
      %s107 = sphi 0, %s107
      %s109 = sphi 0, %s107
      %s110 = sphi 0, %s109
      %s124 = sphi 0, %s110
      %s128 = sphi 0, %s128
      %s130 = sphi 0, %s128
      %s131 = sphi 0, %s130
      %s145 = sphi 0, %s131
      %s149 = sphi 0, %s149
      %s151 = sphi 0, %s149
      %s152 = sphi 0, %s151
      %s166 = sphi 0, %s152
      %s170 = sphi 0, %s170
      %s172 = sphi 0, %s170
      %s173 = sphi 0, %s172
      %s187 = sphi 0, %s173
      %s191 = sphi 0, %s191
      %s193 = sphi 0, %s191
      %s194 = sphi 0, %s193
      %s208 = sphi 0, %s194
      %s212 = sphi 0, %s212
      %s214 = sphi 0, %s212
      %s215 = sphi 0, %s214
      %s229 = sphi 0, %s215
      %s237 = sphi 0, %s239
      %s240 = sphi 0, %s237
      %s241 = sphi 0, %s240
      %s257 = sphi 0, %s241
      %s265 = sphi 0, %s267
      %s268 = sphi 0, %s265
      %s269 = sphi 0, %s268
      %s285 = sphi 0, %s269
      %s293 = sphi 0, %s295
      %s296 = sphi 0, %s293
      %s297 = sphi 0, %s296
      %s313 = sphi 0, %s297
    $region4: #{tpu_custom_call.1} parent=1 // loop_header_branch
      %32 = sbr.rel (%p30) target = $region8
    $region5: #{tpu_custom_call.1} parent=1 // loop_body
      %s34 = ssub.s32 %s29, 1
      %s35 = ssub.s32 %s29, 2
      %s42 = sadd.s32 1, %s37
      %p43 = scmp.ge.s32.totalorder %s42, 2
      %s44 = scalar_select %p43, 0, %s42
      %s45 = sadd.s32 1, %s36
      %s46 = scalar_select %p43, %s45, %s36
      %p47 = scmp.ge.s32.totalorder %s46, 2
      %s48 = scalar_select %p47, 0, %s46
      %s49 = ssub.s32 %s36, %s48
      %s50 = ssub.s32 %s37, %s44
      %s51 = sor.u32 %s49, %s50
      %p52 = scmp.eq.s32.totalorder %s51, 0
      %s54 = sadd.s32 %s53, 1
      %s55 = scalar_select %p52, %s53, %s54
      %p58 = pneg %p52
      %p59 = scmp.eq.s32.totalorder %s29, 3
      %p60 = por %p58, %p59
      %p61 = scmp.ne.s32.totalorder %s53, %s56
      %p62 = scmp.eq.s32.totalorder %s29, 0
      %p63 = por %p61, %p62
      %p64 = scmp.ne.s32.totalorder %s53, %s56
      %p65 = scmp.eq.s32.totalorder %s34, 3
      %p66 = por %p64, %p65
      %p67 = scmp.ne.s32.totalorder %s56, %s57
      %p68 = scmp.eq.s32.totalorder %s34, 0
      %p69 = por %p67, %p68
      %p70 = scmp.ne.s32.totalorder %s56, %s57
      %p71 = scmp.eq.s32.totalorder %s35, 3
      %p72 = por %p70, %p71
      %p74 = scmp.ne.s32.totalorder %s57, %s73
      %p75 = scmp.eq.s32.totalorder %s35, 0
      %p76 = por %p74, %p75
      %s77 = sadd.s32 %s37, 1
      %s78 = sadd.s32 %s44, 1
      %s79 = ssub.s32 %s36, %s48
      %s80 = ssub.s32 %s77, %s78
      %s81 = sor.u32 %s79, %s80
      %p82 = scmp.eq.s32.totalorder %s81, 0
      %s84 = sadd.s32 %s83, 1
      %s85 = scalar_select %p82, %s83, %s84
      %p88 = pneg %p82
      %p89 = scmp.eq.s32.totalorder %s29, 3
      %p90 = por %p88, %p89
      %p91 = scmp.ne.s32.totalorder %s83, %s86
      %p92 = scmp.eq.s32.totalorder %s29, 0
      %p93 = por %p91, %p92
      %p94 = scmp.ne.s32.totalorder %s83, %s86
      %p95 = scmp.eq.s32.totalorder %s34, 3
      %p96 = por %p94, %p95
      %p97 = scmp.ne.s32.totalorder %s86, %s87
      %p98 = scmp.eq.s32.totalorder %s34, 0
      %p99 = por %p97, %p98
      %p100 = scmp.ne.s32.totalorder %s86, %s87
      %p101 = scmp.eq.s32.totalorder %s35, 3
      %p102 = por %p100, %p101
      %p104 = scmp.ne.s32.totalorder %s87, %s103
      %p105 = scmp.eq.s32.totalorder %s35, 0
      %p106 = por %p104, %p105
      %s108 = sadd.s32 %s107, 1
      %p111 = scmp.eq.s32.totalorder %s29, 3
      %p112 = scmp.ne.s32.totalorder %s107, %s109
      %p113 = scmp.eq.s32.totalorder %s29, 0
      %p114 = por %p112, %p113
      %p115 = scmp.ne.s32.totalorder %s107, %s109
      %p116 = scmp.eq.s32.totalorder %s34, 3
      %p117 = por %p115, %p116
      %p118 = scmp.ne.s32.totalorder %s109, %s110
      %p119 = scmp.eq.s32.totalorder %s34, 0
      %p120 = por %p118, %p119
      %p121 = scmp.ne.s32.totalorder %s109, %s110
      %p122 = scmp.eq.s32.totalorder %s35, 3
      %p123 = por %p121, %p122
      %p125 = scmp.ne.s32.totalorder %s110, %s124
      %p126 = scmp.eq.s32.totalorder %s35, 0
      %p127 = por %p125, %p126
      %s129 = sadd.s32 %s128, 1
      %p132 = scmp.eq.s32.totalorder %s29, 3
      %p133 = scmp.ne.s32.totalorder %s128, %s130
      %p134 = scmp.eq.s32.totalorder %s29, 0
      %p135 = por %p133, %p134
      %p136 = scmp.ne.s32.totalorder %s128, %s130
      %p137 = scmp.eq.s32.totalorder %s34, 3
      %p138 = por %p136, %p137
      %p139 = scmp.ne.s32.totalorder %s130, %s131
      %p140 = scmp.eq.s32.totalorder %s34, 0
      %p141 = por %p139, %p140
      %p142 = scmp.ne.s32.totalorder %s130, %s131
      %p143 = scmp.eq.s32.totalorder %s35, 3
      %p144 = por %p142, %p143
      %p146 = scmp.ne.s32.totalorder %s131, %s145
      %p147 = scmp.eq.s32.totalorder %s35, 0
      %p148 = por %p146, %p147
      %s150 = sadd.s32 %s149, 1
      %p153 = scmp.eq.s32.totalorder %s29, 3
      %p154 = scmp.ne.s32.totalorder %s149, %s151
      %p155 = scmp.eq.s32.totalorder %s29, 0
      %p156 = por %p154, %p155
      %p157 = scmp.ne.s32.totalorder %s149, %s151
      %p158 = scmp.eq.s32.totalorder %s34, 3
      %p159 = por %p157, %p158
      %p160 = scmp.ne.s32.totalorder %s151, %s152
      %p161 = scmp.eq.s32.totalorder %s34, 0
      %p162 = por %p160, %p161
      %p163 = scmp.ne.s32.totalorder %s151, %s152
      %p164 = scmp.eq.s32.totalorder %s35, 3
      %p165 = por %p163, %p164
      %p167 = scmp.ne.s32.totalorder %s152, %s166
      %p168 = scmp.eq.s32.totalorder %s35, 0
      %p169 = por %p167, %p168
      %s171 = sadd.s32 %s170, 1
      %p174 = scmp.eq.s32.totalorder %s29, 3
      %p175 = scmp.ne.s32.totalorder %s170, %s172
      %p176 = scmp.eq.s32.totalorder %s29, 0
      %p177 = por %p175, %p176
      %p178 = scmp.ne.s32.totalorder %s170, %s172
      %p179 = scmp.eq.s32.totalorder %s34, 3
      %p180 = por %p178, %p179
      %p181 = scmp.ne.s32.totalorder %s172, %s173
      %p182 = scmp.eq.s32.totalorder %s34, 0
      %p183 = por %p181, %p182
      %p184 = scmp.ne.s32.totalorder %s172, %s173
      %p185 = scmp.eq.s32.totalorder %s35, 3
      %p186 = por %p184, %p185
      %p188 = scmp.ne.s32.totalorder %s173, %s187
      %p189 = scmp.eq.s32.totalorder %s35, 0
      %p190 = por %p188, %p189
      %s192 = sadd.s32 %s191, 1
      %p195 = scmp.eq.s32.totalorder %s29, 3
      %p196 = scmp.ne.s32.totalorder %s191, %s193
      %p197 = scmp.eq.s32.totalorder %s29, 0
      %p198 = por %p196, %p197
      %p199 = scmp.ne.s32.totalorder %s191, %s193
      %p200 = scmp.eq.s32.totalorder %s34, 3
      %p201 = por %p199, %p200
      %p202 = scmp.ne.s32.totalorder %s193, %s194
      %p203 = scmp.eq.s32.totalorder %s34, 0
      %p204 = por %p202, %p203
      %p205 = scmp.ne.s32.totalorder %s193, %s194
      %p206 = scmp.eq.s32.totalorder %s35, 3
      %p207 = por %p205, %p206
      %p209 = scmp.ne.s32.totalorder %s194, %s208
      %p210 = scmp.eq.s32.totalorder %s35, 0
      %p211 = por %p209, %p210
      %s213 = sadd.s32 %s212, 1
      %p216 = scmp.eq.s32.totalorder %s29, 3
      %p217 = scmp.ne.s32.totalorder %s212, %s214
      %p218 = scmp.eq.s32.totalorder %s29, 0
      %p219 = por %p217, %p218
      %p220 = scmp.ne.s32.totalorder %s212, %s214
      %p221 = scmp.eq.s32.totalorder %s34, 3
      %p222 = por %p220, %p221
      %p223 = scmp.ne.s32.totalorder %s214, %s215
      %p224 = scmp.eq.s32.totalorder %s34, 0
      %p225 = por %p223, %p224
      %p226 = scmp.ne.s32.totalorder %s214, %s215
      %p227 = scmp.eq.s32.totalorder %s35, 3
      %p228 = por %p226, %p227
      %p230 = scmp.ne.s32.totalorder %s215, %s229
      %p231 = scmp.eq.s32.totalorder %s35, 0
      %p232 = por %p230, %p231
      %s233 = ssub.s32 %s36, %s48
      %s234 = ssub.s32 %s37, %s44
      %s235 = sor.u32 %s233, %s234
      %p236 = scmp.eq.s32.totalorder %s235, 0
      %s238 = sadd.s32 %s237, 1
      %s239 = scalar_select %p236, %s237, %s238
      %p242 = pneg %p236
      %p243 = scmp.eq.s32.totalorder %s29, 3
      %p244 = por %p242, %p243
      %p245 = scmp.ne.s32.totalorder %s237, %s240
      %p246 = scmp.eq.s32.totalorder %s29, 0
      %p247 = por %p245, %p246
      %p248 = scmp.ne.s32.totalorder %s237, %s240
      %p249 = scmp.eq.s32.totalorder %s34, 3
      %p250 = por %p248, %p249
      %p251 = scmp.ne.s32.totalorder %s240, %s241
      %p252 = scmp.eq.s32.totalorder %s34, 0
      %p253 = por %p251, %p252
      %p254 = scmp.ne.s32.totalorder %s240, %s241
      %p255 = scmp.eq.s32.totalorder %s35, 3
      %p256 = por %p254, %p255
      %p258 = scmp.ne.s32.totalorder %s241, %s257
      %p259 = scmp.eq.s32.totalorder %s35, 0
      %p260 = por %p258, %p259
      %s261 = ssub.s32 %s36, %s48
      %s262 = ssub.s32 %s37, %s44
      %s263 = sor.u32 %s261, %s262
      %p264 = scmp.eq.s32.totalorder %s263, 0
      %s266 = sadd.s32 %s265, 1
      %s267 = scalar_select %p264, %s265, %s266
      %p270 = pneg %p264
      %p271 = scmp.eq.s32.totalorder %s29, 3
      %p272 = por %p270, %p271
      %p273 = scmp.ne.s32.totalorder %s265, %s268
      %p274 = scmp.eq.s32.totalorder %s29, 0
      %p275 = por %p273, %p274
      %p276 = scmp.ne.s32.totalorder %s265, %s268
      %p277 = scmp.eq.s32.totalorder %s34, 3
      %p278 = por %p276, %p277
      %p279 = scmp.ne.s32.totalorder %s268, %s269
      %p280 = scmp.eq.s32.totalorder %s34, 0
      %p281 = por %p279, %p280
      %p282 = scmp.ne.s32.totalorder %s268, %s269
      %p283 = scmp.eq.s32.totalorder %s35, 3
      %p284 = por %p282, %p283
      %p286 = scmp.ne.s32.totalorder %s269, %s285
      %p287 = scmp.eq.s32.totalorder %s35, 0
      %p288 = por %p286, %p287
      %s289 = ssub.s32 %s36, %s48
      %s290 = ssub.s32 %s37, %s44
      %s291 = sor.u32 %s289, %s290
      %p292 = scmp.eq.s32.totalorder %s291, 0
      %s294 = sadd.s32 %s293, 1
      %s295 = scalar_select %p292, %s293, %s294
      %p298 = pneg %p292
      %p299 = scmp.eq.s32.totalorder %s29, 3
      %p300 = por %p298, %p299
      %p301 = scmp.ne.s32.totalorder %s293, %s296
      %p302 = scmp.eq.s32.totalorder %s29, 0
      %p303 = por %p301, %p302
      %p304 = scmp.ne.s32.totalorder %s293, %s296
      %p305 = scmp.eq.s32.totalorder %s34, 3
      %p306 = por %p304, %p305
      %p307 = scmp.ne.s32.totalorder %s296, %s297
      %p308 = scmp.eq.s32.totalorder %s34, 0
      %p309 = por %p307, %p308
      %p310 = scmp.ne.s32.totalorder %s296, %s297
      %p311 = scmp.eq.s32.totalorder %s35, 3
      %p312 = por %p310, %p311
      %p314 = scmp.ne.s32.totalorder %s297, %s313
      %p315 = scmp.eq.s32.totalorder %s35, 0
      %p316 = por %p314, %p315
      %p317 = scmp.le.s32.totalorder 1, %s29
      %p318 = scmp.lt.s32.totalorder %s29, 5
      %p319 = pnand %p317, %p318
      %p320 = pneg %p319
      // Predicated region
      $region9: #{tpu_custom_call.1} parent=5 // pred_check
        _
      $region10: #{tpu_custom_call.1} parent=5 // pred_check_branch
        %322 = sbr.rel (%p319) target = $region12
      $region11: #{tpu_custom_call.1} parent=5 // pred_region
        %s323 = ssub.s32 %s29, 1
        // Predicated region
        $region13: #{tpu_custom_call.1} parent=11 // pred_check
          %p324 = pneg %p120
        $region14: #{tpu_custom_call.1} parent=11 // pred_check_branch
          %326 = sbr.rel (%p324) target = $region16
        $region15: #{tpu_custom_call.1} parent=11 // pred_region
          _
        $region16: #{tpu_custom_call.1} parent=11 // pred_fallthru
          _
        // Predicated region
        $region17: #{tpu_custom_call.1} parent=11 // pred_check
          %p327 = pneg %p141
        $region18: #{tpu_custom_call.1} parent=11 // pred_check_branch
          %329 = sbr.rel (%p327) target = $region20
        $region19: #{tpu_custom_call.1} parent=11 // pred_region
          _
        $region20: #{tpu_custom_call.1} parent=11 // pred_fallthru
          _
        // Predicated region
        $region21: #{tpu_custom_call.1} parent=11 // pred_check
          %p330 = pneg %p162
        $region22: #{tpu_custom_call.1} parent=11 // pred_check_branch
          %332 = sbr.rel (%p330) target = $region24
        $region23: #{tpu_custom_call.1} parent=11 // pred_region
          _
        $region24: #{tpu_custom_call.1} parent=11 // pred_fallthru
          _
        // Predicated region
        $region25: #{tpu_custom_call.1} parent=11 // pred_check
          %p333 = pneg %p183
        $region26: #{tpu_custom_call.1} parent=11 // pred_check_branch
          %335 = sbr.rel (%p333) target = $region28
        $region27: #{tpu_custom_call.1} parent=11 // pred_region
          _
        $region28: #{tpu_custom_call.1} parent=11 // pred_fallthru
          _
        // Predicated region
        $region29: #{tpu_custom_call.1} parent=11 // pred_check
          %p336 = pneg %p204
        $region30: #{tpu_custom_call.1} parent=11 // pred_check_branch
          %338 = sbr.rel (%p336) target = $region32
        $region31: #{tpu_custom_call.1} parent=11 // pred_region
          _
        $region32: #{tpu_custom_call.1} parent=11 // pred_fallthru
          _
        // Predicated region
        $region33: #{tpu_custom_call.1} parent=11 // pred_check
          %p339 = pneg %p225
        $region34: #{tpu_custom_call.1} parent=11 // pred_check_branch
          %341 = sbr.rel (%p339) target = $region36
        $region35: #{tpu_custom_call.1} parent=11 // pred_region
          _
        $region36: #{tpu_custom_call.1} parent=11 // pred_fallthru
          _
      $region12: #{tpu_custom_call.1} parent=5 // pred_fallthru
        _
      %p342 = scmp.lt.s32.totalorder %s29, 4
      // Predicated region
      $region37: #{tpu_custom_call.1} parent=5 // pred_check
        %p343 = pneg %p342
      $region38: #{tpu_custom_call.1} parent=5 // pred_check_branch
        %345 = sbr.rel (%p343) target = $region40
      $region39: #{tpu_custom_call.1} parent=5 // pred_region
        // Predicated region
        $region41: #{tpu_custom_call.1} parent=39 // pred_check
          %p346 = pneg %p63
        $region42: #{tpu_custom_call.1} parent=39 // pred_check_branch
          %348 = sbr.rel (%p346) target = $region44
        $region43: #{tpu_custom_call.1} parent=39 // pred_region
          %s349 = sand.u32 %s53, 1
          %s350 = scalar_lea.sflag [#allocation3], %s349
          %s351 = sand.u32 %s53, 1
          %s352 = smul.addr %s351, 4
          %s353 = scalar_lea.vmem [#allocation2], %s352
          %s355 = ssub.s32 64, 64
          %356 = vsyncadd %s350, %s355
          %s357 = smul.addr %s36, 3
          %s358 = sadd.s32 %s37, %s357
          %s359 = smul.addr %s358, 64
          %s360 = scalar_lea.hbm %s0, %s359
          %s362 = sshll.u32 %s353, 4
          %s363 = int_to_ptr.vmem [resolvable:$true] %s362
          %365 = dma.hbm_to_vmem [thread:$0]  %s360, 64, %s363, %s350
        $region44: #{tpu_custom_call.1} parent=39 // pred_fallthru
          _
        // Predicated region
        $region45: #{tpu_custom_call.1} parent=39 // pred_check
          %p366 = pneg %p93
        $region46: #{tpu_custom_call.1} parent=39 // pred_check_branch
          %368 = sbr.rel (%p366) target = $region48
        $region47: #{tpu_custom_call.1} parent=39 // pred_region
          %s369 = sand.u32 %s83, 1
          %s370 = scalar_lea.sflag [#allocation6], %s369
          %s371 = sand.u32 %s83, 1
          %s372 = smul.addr %s371, 4
          %s373 = scalar_lea.vmem [#allocation5], %s372
          %s374 = sadd.s32 %s37, 1
          %s376 = ssub.s32 64, 64
          %377 = vsyncadd %s370, %s376
          %s378 = smul.addr %s36, 3
          %s379 = sadd.s32 %s374, %s378
          %s380 = smul.addr %s379, 64
          %s381 = scalar_lea.hbm %s1, %s380
          %s383 = sshll.u32 %s373, 4
          %s384 = int_to_ptr.vmem [resolvable:$true] %s383
          %386 = dma.hbm_to_vmem [thread:$0]  %s381, 64, %s384, %s370
        $region48: #{tpu_custom_call.1} parent=39 // pred_fallthru
          _
      $region40: #{tpu_custom_call.1} parent=5 // pred_fallthru
        _
      %p387 = scmp.le.s32.totalorder 1, %s29
      %p388 = scmp.lt.s32.totalorder %s29, 5
      %p389 = pnand %p387, %p388
      %p390 = pneg %p389
      // Predicated region
      $region49: #{tpu_custom_call.1} parent=5 // pred_check
        _
      $region50: #{tpu_custom_call.1} parent=5 // pred_check_branch
        %392 = sbr.rel (%p389) target = $region52
      $region51: #{tpu_custom_call.1} parent=5 // pred_region
        %s393 = ssub.s32 %s29, 1
        %s394 = sand.u32 %s56, 1
        %s395 = scalar_lea.sflag [#allocation3], %s394
        %s396 = sand.u32 %s56, 1
        %s397 = smul.addr %s396, 4
        %s398 = scalar_lea.vmem [#allocation2], %s397
        // Predicated region
        $region53: #{tpu_custom_call.1} parent=51 // pred_check
          %p399 = pneg %p69
        $region54: #{tpu_custom_call.1} parent=51 // pred_check_branch
          %401 = sbr.rel (%p399) target = $region56
        $region55: #{tpu_custom_call.1} parent=51 // pred_region
          %402 = dma.done %s395, 64
        $region56: #{tpu_custom_call.1} parent=51 // pred_fallthru
          _
        %s403 = sand.u32 %s86, 1
        %s404 = scalar_lea.sflag [#allocation6], %s403
        %s405 = sand.u32 %s86, 1
        %s406 = smul.addr %s405, 4
        %s407 = scalar_lea.vmem [#allocation5], %s406
        // Predicated region
        $region57: #{tpu_custom_call.1} parent=51 // pred_check
          %p408 = pneg %p99
        $region58: #{tpu_custom_call.1} parent=51 // pred_check_branch
          %410 = sbr.rel (%p408) target = $region60
        $region59: #{tpu_custom_call.1} parent=51 // pred_region
          %411 = dma.done %s404, 64
        $region60: #{tpu_custom_call.1} parent=51 // pred_fallthru
          _
        %s412 = sand.u32 %s56, 1
        %s413 = scalar_lea.sflag [#allocation3], %s412
        %s414 = sand.u32 %s56, 1
        %s415 = smul.addr %s414, 4
        %s416 = scalar_lea.vmem [#allocation2], %s415
        %p417 = pneg %p69
        %p418 = pneg %p66
        %s419 = sand.u32 %s86, 1
        %s420 = scalar_lea.sflag [#allocation6], %s419
        %s421 = sand.u32 %s86, 1
        %s422 = smul.addr %s421, 4
        %s423 = scalar_lea.vmem [#allocation5], %s422
        %p424 = pneg %p99
        %p425 = pneg %p96
        %p426 = pneg %p120
        %p427 = pneg %p117
        %p428 = pneg %p141
        %p429 = pneg %p138
        %p430 = pneg %p162
        %p431 = pneg %p159
        %p432 = pneg %p183
        %p433 = pneg %p180
        %p434 = pneg %p204
        %p435 = pneg %p201
        %p436 = pneg %p225
        %p437 = pneg %p222
        %p438 = pneg %p253
        %p439 = pneg %p250
        %s440 = sand.u32 %s240, 1
        %s441 = scalar_lea.sflag [#allocation4], %s440
        %s442 = sand.u32 %s240, 1
        %s443 = smul.addr %s442, 4
        %s444 = scalar_lea.vmem [#allocation7], %s443
        %p445 = pneg %p281
        %p446 = pneg %p278
        %s447 = sand.u32 %s34, 1
        %s448 = scalar_lea.sflag [#allocation9], %s447
        %s449 = sand.u32 %s268, 1
        %s450 = smul.addr %s449, 4
        %s451 = scalar_lea.vmem [#allocation8], %s450
        %p452 = pneg %p309
        %p453 = pneg %p306
        %s454 = sand.u32 %s34, 1
        %s455 = scalar_lea.sflag [#allocation9], %s454
        %s456 = sand.u32 %s296, 1
        %s457 = smul.addr %s456, 4
        %s458 = scalar_lea.vmem [#allocation10], %s457
        %s459 = sadd.s32 %s39, 1
        %v460 = vld [vmem:[%s398] sm:$0xf]
        %v461 = vld [vmem:[%s407] sm:$0xf]
        %v462 = vlaneseq
        %v463 = vand.u32 %v462, 127
        %v464 = vcombine.high %v463, 0
        %v466 = vunpack.c.l.s4 1983009808
        %v467 = vunpack.c.0.s8 %v466
        %v468 = vlaneseq
        %v469 = vshrl.u32 %v468, 7
        %v470 = vsub.s32 %v467, %v469
        %v471 = vrot.slane %v463, %v470
        %v473 = vunpack.c.l.s4 1983009808
        %v474 = vunpack.c.0.s8 %v473
        %v475 = vlaneseq
        %v476 = vshrl.u32 %v475, 7
        %v477 = vsub.s32 %v474, %v476
        %v478 = vrot.slane %v464, %v477
        %v479 = vcombine.high %v471, 0
        %v481 = vunpack.c.l.s4 1934713408
        %v482 = vunpack.c.0.s8 %v481
        %v483 = vlaneseq
        %v484 = vshrl.u32 %v483, 7
        %v485 = vsub.s32 %v482, %v484
        %v486 = vrot.slane %v471, %v485
        %v488 = vunpack.c.l.s4 1934713408
        %v489 = vunpack.c.0.s8 %v488
        %v490 = vlaneseq
        %v491 = vshrl.u32 %v490, 7
        %v492 = vsub.s32 %v489, %v491
        %v493 = vrot.slane %v479, %v492
        %v494 = vcombine.high %v478, 0
        %v496 = vunpack.c.l.s4 1934713408
        %v497 = vunpack.c.0.s8 %v496
        %v498 = vlaneseq
        %v499 = vshrl.u32 %v498, 7
        %v500 = vsub.s32 %v497, %v499
        %v501 = vrot.slane %v478, %v500
        %v503 = vunpack.c.l.s4 1934713408
        %v504 = vunpack.c.0.s8 %v503
        %v505 = vlaneseq
        %v506 = vshrl.u32 %v505, 7
        %v507 = vsub.s32 %v504, %v506
        %v508 = vrot.slane %v494, %v507
        %v509 = vcombine.high %v486, 0
        %v510 = vcombine.high %v493, 0
        %v511 = vcombine.high %v501, 0
        %v512 = vcombine.high %v508, 0
        %513 = vrot.lane.b32.xlu0 %v509, 16
        %v514 = vpop.permute.xlu0 %513
        %515 = vrot.lane.b32.xlu0 %v493, 32
        %v516 = vpop.permute.xlu0 %515
        %517 = vrot.lane.b32.xlu0 %v510, 48
        %v518 = vpop.permute.xlu0 %517
        %519 = vrot.lane.b32.xlu0 %v501, 64
        %v520 = vpop.permute.xlu0 %519
        %521 = vrot.lane.b32.xlu0 %v511, 80
        %v522 = vpop.permute.xlu0 %521
        %523 = vrot.lane.b32.xlu0 %v508, 96
        %v524 = vpop.permute.xlu0 %523
        %525 = vrot.lane.b32.xlu0 %v512, 112
        %v526 = vpop.permute.xlu0 %525
        %vm527 = vcmask 130048
        %v528 = vsel %vm527, %v486, %v514
        %vm529 = vcmask 261120
        %v530 = vsel %vm529, %v528, %v516
        %vm531 = vcmask 392192
        %v532 = vsel %vm531, %v530, %v518
        %vm533 = vcmask 523264
        %v534 = vsel %vm533, %v532, %v520
        %vm535 = vcmask 654336
        %v536 = vsel %vm535, %v534, %v522
        %vm537 = vcmask 785408
        %v538 = vsel %vm537, %v536, %v524
        %vm539 = vcmask 916480
        %v540 = vsel %vm539, %v538, %v526
        %v541 = vlaneseq
        %v542 = vshrl.u32 %v541, 7
        %v543 = vadd.s32 %v542, 8
        %v544 = vcombine.high %v542, 0
        %v546 = vunpack.c.l.s4 1983009808
        %v547 = vunpack.c.0.s8 %v546
        %v548 = vlaneseq
        %v549 = vshrl.u32 %v548, 7
        %v550 = vsub.s32 %v547, %v549
        %v551 = vrot.slane %v542, %v550
        %v553 = vunpack.c.l.s4 1983009808
        %v554 = vunpack.c.0.s8 %v553
        %v555 = vlaneseq
        %v556 = vshrl.u32 %v555, 7
        %v557 = vsub.s32 %v554, %v556
        %v558 = vrot.slane %v544, %v557
        %v559 = vcombine.high %v551, 0
        %v561 = vunpack.c.l.s4 1934713408
        %v562 = vunpack.c.0.s8 %v561
        %v563 = vlaneseq
        %v564 = vshrl.u32 %v563, 7
        %v565 = vsub.s32 %v562, %v564
        %v566 = vrot.slane %v551, %v565
        %v568 = vunpack.c.l.s4 1934713408
        %v569 = vunpack.c.0.s8 %v568
        %v570 = vlaneseq
        %v571 = vshrl.u32 %v570, 7
        %v572 = vsub.s32 %v569, %v571
        %v573 = vrot.slane %v559, %v572
        %v574 = vcombine.high %v558, 0
        %v576 = vunpack.c.l.s4 1934713408
        %v577 = vunpack.c.0.s8 %v576
        %v578 = vlaneseq
        %v579 = vshrl.u32 %v578, 7
        %v580 = vsub.s32 %v577, %v579
        %v581 = vrot.slane %v558, %v580
        %v583 = vunpack.c.l.s4 1934713408
        %v584 = vunpack.c.0.s8 %v583
        %v585 = vlaneseq
        %v586 = vshrl.u32 %v585, 7
        %v587 = vsub.s32 %v584, %v586
        %v588 = vrot.slane %v574, %v587
        %v589 = vcombine.high %v566, 0
        %v590 = vcombine.high %v573, 0
        %v591 = vcombine.high %v581, 0
        %v592 = vcombine.high %v588, 0
        %v593 = vcombine.high %v543, 0
        %v595 = vunpack.c.l.s4 1983009808
        %v596 = vunpack.c.0.s8 %v595
        %v597 = vlaneseq
        %v598 = vshrl.u32 %v597, 7
        %v599 = vsub.s32 %v596, %v598
        %v600 = vrot.slane %v543, %v599
        %v602 = vunpack.c.l.s4 1983009808
        %v603 = vunpack.c.0.s8 %v602
        %v604 = vlaneseq
        %v605 = vshrl.u32 %v604, 7
        %v606 = vsub.s32 %v603, %v605
        %v607 = vrot.slane %v593, %v606
        %v608 = vcombine.high %v600, 0
        %v610 = vunpack.c.l.s4 1934713408
        %v611 = vunpack.c.0.s8 %v610
        %v612 = vlaneseq
        %v613 = vshrl.u32 %v612, 7
        %v614 = vsub.s32 %v611, %v613
        %v615 = vrot.slane %v600, %v614
        %v617 = vunpack.c.l.s4 1934713408
        %v618 = vunpack.c.0.s8 %v617
        %v619 = vlaneseq
        %v620 = vshrl.u32 %v619, 7
        %v621 = vsub.s32 %v618, %v620
        %v622 = vrot.slane %v608, %v621
        %v623 = vcombine.high %v607, 0
        %v625 = vunpack.c.l.s4 1934713408
        %v626 = vunpack.c.0.s8 %v625
        %v627 = vlaneseq
        %v628 = vshrl.u32 %v627, 7
        %v629 = vsub.s32 %v626, %v628
        %v630 = vrot.slane %v607, %v629
        %v632 = vunpack.c.l.s4 1934713408
        %v633 = vunpack.c.0.s8 %v632
        %v634 = vlaneseq
        %v635 = vshrl.u32 %v634, 7
        %v636 = vsub.s32 %v633, %v635
        %v637 = vrot.slane %v623, %v636
        %v638 = vcombine.high %v615, 0
        %v639 = vcombine.high %v622, 0
        %v640 = vcombine.high %v630, 0
        %v641 = vcombine.high %v637, 0
        %642 = vrot.lane.b32.xlu0 %v589, 16
        %v643 = vpop.permute.xlu0 %642
        %644 = vrot.lane.b32.xlu0 %v573, 32
        %v645 = vpop.permute.xlu0 %644
        %646 = vrot.lane.b32.xlu0 %v590, 48
        %v647 = vpop.permute.xlu0 %646
        %648 = vrot.lane.b32.xlu0 %v581, 64
        %v649 = vpop.permute.xlu0 %648
        %650 = vrot.lane.b32.xlu0 %v591, 80
        %v651 = vpop.permute.xlu0 %650
        %652 = vrot.lane.b32.xlu0 %v588, 96
        %v653 = vpop.permute.xlu0 %652
        %654 = vrot.lane.b32.xlu0 %v592, 112
        %v655 = vpop.permute.xlu0 %654
        %656 = vrot.lane.b32.xlu0 %v638, 16
        %v657 = vpop.permute.xlu0 %656
        %658 = vrot.lane.b32.xlu0 %v622, 32
        %v659 = vpop.permute.xlu0 %658
        %660 = vrot.lane.b32.xlu0 %v639, 48
        %v661 = vpop.permute.xlu0 %660
        %662 = vrot.lane.b32.xlu0 %v630, 64
        %v663 = vpop.permute.xlu0 %662
        %664 = vrot.lane.b32.xlu0 %v640, 80
        %v665 = vpop.permute.xlu0 %664
        %666 = vrot.lane.b32.xlu0 %v637, 96
        %v667 = vpop.permute.xlu0 %666
        %668 = vrot.lane.b32.xlu0 %v641, 112
        %v669 = vpop.permute.xlu0 %668
        %v670 = vsel %vm527, %v566, %v643
        %v671 = vsel %vm529, %v670, %v645
        %v672 = vsel %vm531, %v671, %v647
        %v673 = vsel %vm533, %v672, %v649
        %v674 = vsel %vm535, %v673, %v651
        %v675 = vsel %vm537, %v674, %v653
        %v676 = vsel %vm539, %v675, %v655
        %v677 = vsel %vm527, %v615, %v657
        %v678 = vsel %vm529, %v677, %v659
        %v679 = vsel %vm531, %v678, %v661
        %v680 = vsel %vm533, %v679, %v663
        %v681 = vsel %vm535, %v680, %v665
        %v682 = vsel %vm537, %v681, %v667
        %v683 = vsel %vm539, %v682, %v669
        %s684 = smul.u32 %s39, 8
        %v685 = vstv %s684
        %v686 = vadd.s32 %v685, %v676
        %v687 = vadd.s32 %v685, %v683
        %vm688 = vcmp.ne.s32.totalorder %v540, 15
        %v689 = vsel %vm688, 1, 0
        %v690 = vlaneseq
        %v691 = vshrl.u32 %v690, 7
        %v692 = vsub.s32 0, %v691
        %v693 = vrot.slane %v689, %v692
        %vm694 = vcmp.eq.s32.totalorder %v693, 1
        %v695 = vsel %vm694, %v460, 0.0
        %v696 = vsel %vm694, %v461, 0.0
        %vm697 = vcmp.ne.s32.totalorder %v540, 0
        %v698 = vsel %vm697, 1, 0
        %v699 = vlaneseq
        %v700 = vshrl.u32 %v699, 7
        %v701 = vsub.s32 0, %v700
        %v702 = vrot.slane %v698, %v701
        %vm703 = vcmp.eq.s32.totalorder %v702, 1
        %v704 = vsel %vm703, %v460, 0.0
        %v705 = vsel %vm703, %v461, 0.0
        %v706 = vld [vmem:[%s2] sm:$0xf]
        %v707 = vld [vmem:[%s3] sm:$0xf]
        %709 = vrot.lane.b32.xlu0 %v696, 1
        %v710 = vpop.permute.xlu0 %709
        %713 = vrot.lane.b32.xlu0 %v695, 1
        %v714 = vpop.permute.xlu0 %713
        %vm715 = vcmask 7168
        %v716 = vsel %vm715, %v714, %v710
        %v719 = vsel %vm715, %v710, %v714
        %722 = vrot.lane.b32.xlu0 %v704, 127
        %v723 = vpop.permute.xlu0 %722
        %724 = vrot.lane.b32.xlu0 %v705, 127
        %v725 = vpop.permute.xlu0 %724
        %vm726 = vcmask 1039360
        %v727 = vsel %vm726, %v723, %v725
        %v731 = vsel %vm726, %v725, %v723
        %732 = vrot.lane.b32.xlu0 %v695, 113
        %v733 = vpop.permute.xlu0 %732
        %734 = vrot.lane.b32.xlu0 %v696, 113
        %v735 = vpop.permute.xlu0 %734
        %vm736 = vcmask 924672
        %v737 = vsel %vm736, %v733, %v735
        %v740 = vsel %vm736, %v735, %v733
        %743 = vrot.lane.b32.xlu0 %v460, 112
        %v744 = vpop.permute.xlu0 %743
        %745 = vrot.lane.b32.xlu0 %v461, 112
        %v746 = vpop.permute.xlu0 %745
        %v747 = vsel %vm539, %v744, %v746
        %v751 = vsel %vm539, %v746, %v744
        %752 = vrot.lane.b32.xlu0 %v704, 111
        %v753 = vpop.permute.xlu0 %752
        %754 = vrot.lane.b32.xlu0 %v705, 111
        %v755 = vpop.permute.xlu0 %754
        %vm756 = vcmask 908288
        %v757 = vsel %vm756, %v753, %v755
        %v760 = vsel %vm756, %v755, %v753
        %761 = vrot.lane.b32.xlu0 %v695, 97
        %v762 = vpop.permute.xlu0 %761
        %763 = vrot.lane.b32.xlu0 %v696, 97
        %v764 = vpop.permute.xlu0 %763
        %vm765 = vcmask 793600
        %v766 = vsel %vm765, %v762, %v764
        %v770 = vsel %vm765, %v764, %v762
        %771 = vrot.lane.b32.xlu0 %v460, 96
        %v772 = vpop.permute.xlu0 %771
        %773 = vrot.lane.b32.xlu0 %v461, 96
        %v774 = vpop.permute.xlu0 %773
        %v775 = vsel %vm537, %v772, %v774
        %v778 = vsel %vm537, %v774, %v772
        %779 = vrot.lane.b32.xlu0 %v704, 95
        %v780 = vpop.permute.xlu0 %779
        %781 = vrot.lane.b32.xlu0 %v705, 95
        %v782 = vpop.permute.xlu0 %781
        %vm783 = vcmask 777216
        %v784 = vsel %vm783, %v780, %v782
        %v787 = vsel %vm783, %v782, %v780
        %v788 = vrot.slane %v460, 4
        %v789 = vrot.slane %v461, 4
        %v793 = vrot.slane %v737, 4
        %v794 = vrot.slane %v740, 4
        %v798 = vrot.slane %v757, 4
        %v799 = vrot.slane %v760, 4
        %v803 = vrot.slane %v775, 4
        %v804 = vrot.slane %v778, 4
        %vm807 = vcmask 1043456
        %v808 = vsel %vm807, %v719, %v788
        %v809 = vsel %vm807, %v716, %v789
        %v810 = vsel %vm807, %v727, %v793
        %v811 = vsel %vm807, %v731, %v794
        %v812 = vsel %vm807, %v747, %v798
        %v813 = vsel %vm807, %v751, %v799
        %v814 = vsel %vm807, %v766, %v803
        %v815 = vsel %vm807, %v770, %v804
        %817 = vset.pattern.permute.xlu0 0
        %818 = vperm.xlu0 %817, %v707
        %v819 = vpop.permute.xlu0 %818
        %vm821 = vcmask 293888
        %v823 = vsel %vm821, %v706, 0
        %v825 = vsel %vm807, %v784, 0
        %v828 = vsel %vm807, %v787, 0
        %830 = vmatprep.subr.mxu0 %v809
        %831 = vmatpush1.msra.mxu0 %v808
        %832 = vmatprep.subr.mxu0 %v811
        %833 = vmatpush1.msra.mxu0 %v810
        %834 = vmatprep.subr.mxu0 %v813
        %835 = vmatpush1.msra.mxu0 %v812
        %836 = vmatprep.subr.mxu0 %v815
        %837 = vmatpush1.msra.mxu0 %v814
        %838 = vmatprep.subr.mxu0 %v828
        %839 = vmatpush1.msra.mxu0 %v825
        %840 = vmatprep.subr.mxu0 0.0
        %841 = vmatpush1.msra.mxu0 0.0
        %842 = vmatprep.subr.mxu0 0.0
        %843 = vmatpush1.msra.mxu0 0.0
        %844 = vmatprep.subr.mxu0 0.0
        %845 = vmatpush1.msra.mxu0 0.0
        %846 = vmatprep.subr.mxu0 0.0
        %847 = vmatpush1.msra.mxu0 0.0
        %848 = vmatprep.subr.mxu0 0.0
        %849 = vmatpush1.msra.mxu0 0.0
        %850 = vmatprep.subr.mxu0 0.0
        %851 = vmatpush1.msra.mxu0 0.0
        %852 = vmatprep.subr.mxu0 0.0
        %853 = vmatpush1.msra.mxu0 0.0
        %854 = vmatprep.subr.mxu0 0.0
        %855 = vmatpush1.msra.mxu0 0.0
        %856 = vmatprep.subr.mxu0 0.0
        %857 = vmatpush1.msra.mxu0 0.0
        %858 = vmatprep.subr.mxu0 0.0
        %859 = vmatpush1.msra.mxu0 0.0
        %860 = vmatprep.subr.mxu0 0.0
        %861 = vmatpush1.msra.mxu0 0.0
        %862 = vmatprep.subr.mxu0 0.0
        %863 = vmatpush1.msra.mxu0 0.0
        %864 = vmatprep.subr.mxu0 0.0
        %865 = vmatpush1.msra.mxu0 0.0
        %866 = vmatprep.subr.mxu0 0.0
        %867 = vmatpush1.msra.mxu0 0.0
        %868 = vmatprep.subr.mxu0 0.0
        %869 = vmatpush1.msra.mxu0 0.0
        %870 = vmatprep.subr.mxu0 0.0
        %871 = vmatpush1.msra.mxu0 0.0
        %872 = vmatprep.subr.mxu0 0.0
        %873 = vmatpush1.msra.mxu0 0.0
        %874 = vmatprep.subr.mxu0 0.0
        %875 = vmatpush1.msra.mxu0 0.0
        %876 = vmatprep.subr.mxu0 0.0
        %877 = vmatpush1.msra.mxu0 0.0
        %878 = vmatprep.subr.mxu0 0.0
        %879 = vmatpush1.msra.mxu0 0.0
        %880 = vmatprep.subr.mxu0 0.0
        %881 = vmatpush1.msra.mxu0 0.0
        %882 = vmatprep.subr.mxu0 0.0
        %883 = vmatpush1.msra.mxu0 0.0
        %884 = vmatprep.subr.mxu0 0.0
        %885 = vmatpush1.msra.mxu0 0.0
        %886 = vmatprep.subr.mxu0 0.0
        %887 = vmatpush1.msra.mxu0 0.0
        %888 = vmatprep.subr.mxu0 0.0
        %889 = vmatpush1.msra.mxu0 0.0
        %890 = vmatprep.subr.mxu0 0.0
        %891 = vmatpush1.msra.mxu0 0.0
        %892 = vmatprep.subr.mxu0 0.0
        %893 = vmatpush1.msra.mxu0 0.0
        %894 = vmatprep.mubr.f32.mxu0 0.0
        %895 = vmatmul.mubr.f32.gmra.mrb[0].mxu0 %v823
        %v896 = vpop.f32.mrb[0].mxu0
        %v897 = vadd.f32 %v819, %v896
        %v898 = vpop.f32.mrb[0].mxu0
        %v899 = vadd.f32 %v819, %v898
        %900 = vdwg.mxu0
        %903 = vrot.lane.b32.xlu0 %v897, 96
        %v904 = vpop.permute.xlu0 %903
        %905 = vrot.lane.b32.xlu0 %v899, 96
        %v906 = vpop.permute.xlu0 %905
        %v907 = vsel %vm537, %v904, %v906
        %909 = vst [vmem:[%s451] sm:$0xf] %v907
        %v910 = vsub.f32 0.0, %v897
        %v911 = vsub.f32 0.0, %v899
        %v912 = vmul.f32 %v910, 1.442695
        %v913 = vpow.pop %v912
        %v914 = vmul.f32 %v911, 1.442695
        %v915 = vpow.pop %v914
        %v916 = vadd.f32 %v913, 1.0
        %v917 = vadd.f32 %v915, 1.0
        %v918 = vrcp.pop %v916
        %v919 = vmul.f32 1.0, %v918
        %v920 = vrcp.pop %v917
        %v921 = vmul.f32 1.0, %v920
        %v922 = vmul.f32 %v897, %v919
        %v923 = vmul.f32 %v899, %v921
        %v924 = vadd.s32 %v686, 1
        %v925 = vadd.s32 %v687, 1
        %vm926 = vcmp.ge.s32.totalorder %v924, 3
        %vm927 = vcmp.ge.s32.totalorder %v925, 3
        %vm928 = vcmp.lt.s32.totalorder %v924, 19
        %vm929 = vcmp.lt.s32.totalorder %v925, 19
        %vm930 = vmand %vm926, %vm928
        %vm931 = vmand %vm927, %vm929
        %v932 = vsel %vm930, 1, 0
        %v933 = vsel %vm931, 1, 0
        %v934 = vlaneseq
        %v935 = vshrl.u32 %v934, 7
        %v936 = vsub.s32 0, %v935
        %v937 = vrot.slane %v932, %v936
        %v938 = vlaneseq
        %v939 = vshrl.u32 %v938, 7
        %v940 = vsub.s32 0, %v939
        %v941 = vrot.slane %v933, %v940
        %vm942 = vcmp.eq.s32.totalorder %v937, 1
        %vm943 = vcmp.eq.s32.totalorder %v941, 1
        %v944 = vsel %vm942, %v922, 0.0
        %v945 = vsel %vm943, %v923, 0.0
        %v946 = vsel %vm694, %v944, 0.0
        %v947 = vsel %vm694, %v945, 0.0
        %v948 = vsel %vm703, %v944, 0.0
        %v949 = vsel %vm703, %v945, 0.0
        %v950 = vld [vmem:[%s4] sm:$0xf]
        %v951 = vld [vmem:[%s5] sm:$0xf]
        %953 = vrot.lane.b32.xlu0 %v947, 1
        %v954 = vpop.permute.xlu0 %953
        %957 = vrot.lane.b32.xlu0 %v946, 1
        %v958 = vpop.permute.xlu0 %957
        %v959 = vsel %vm715, %v958, %v954
        %v962 = vsel %vm715, %v954, %v958
        %965 = vrot.lane.b32.xlu0 %v948, 127
        %v966 = vpop.permute.xlu0 %965
        %967 = vrot.lane.b32.xlu0 %v949, 127
        %v968 = vpop.permute.xlu0 %967
        %v969 = vsel %vm726, %v966, %v968
        %v973 = vsel %vm726, %v968, %v966
        %974 = vrot.lane.b32.xlu0 %v946, 113
        %v975 = vpop.permute.xlu0 %974
        %976 = vrot.lane.b32.xlu0 %v947, 113
        %v977 = vpop.permute.xlu0 %976
        %v978 = vsel %vm736, %v975, %v977
        %v981 = vsel %vm736, %v977, %v975
        %984 = vrot.lane.b32.xlu0 %v944, 112
        %v985 = vpop.permute.xlu0 %984
        %986 = vrot.lane.b32.xlu0 %v945, 112
        %v987 = vpop.permute.xlu0 %986
        %v988 = vsel %vm539, %v985, %v987
        %v992 = vsel %vm539, %v987, %v985
        %993 = vrot.lane.b32.xlu0 %v948, 111
        %v994 = vpop.permute.xlu0 %993
        %995 = vrot.lane.b32.xlu0 %v949, 111
        %v996 = vpop.permute.xlu0 %995
        %v997 = vsel %vm756, %v994, %v996
        %v1000 = vsel %vm756, %v996, %v994
        %1001 = vrot.lane.b32.xlu0 %v946, 97
        %v1002 = vpop.permute.xlu0 %1001
        %1003 = vrot.lane.b32.xlu0 %v947, 97
        %v1004 = vpop.permute.xlu0 %1003
        %v1005 = vsel %vm765, %v1002, %v1004
        %v1009 = vsel %vm765, %v1004, %v1002
        %1010 = vrot.lane.b32.xlu0 %v944, 96
        %v1011 = vpop.permute.xlu0 %1010
        %1012 = vrot.lane.b32.xlu0 %v945, 96
        %v1013 = vpop.permute.xlu0 %1012
        %v1014 = vsel %vm537, %v1011, %v1013
        %v1017 = vsel %vm537, %v1013, %v1011
        %1018 = vrot.lane.b32.xlu0 %v948, 95
        %v1019 = vpop.permute.xlu0 %1018
        %1020 = vrot.lane.b32.xlu0 %v949, 95
        %v1021 = vpop.permute.xlu0 %1020
        %v1022 = vsel %vm783, %v1019, %v1021
        %v1025 = vsel %vm783, %v1021, %v1019
        %v1026 = vrot.slane %v944, 4
        %v1027 = vrot.slane %v945, 4
        %v1031 = vrot.slane %v978, 4
        %v1032 = vrot.slane %v981, 4
        %v1036 = vrot.slane %v997, 4
        %v1037 = vrot.slane %v1000, 4
        %v1041 = vrot.slane %v1014, 4
        %v1042 = vrot.slane %v1017, 4
        %v1045 = vsel %vm807, %v962, %v1026
        %v1046 = vsel %vm807, %v959, %v1027
        %v1047 = vsel %vm807, %v969, %v1031
        %v1048 = vsel %vm807, %v973, %v1032
        %v1049 = vsel %vm807, %v988, %v1036
        %v1050 = vsel %vm807, %v992, %v1037
        %v1051 = vsel %vm807, %v1005, %v1041
        %v1052 = vsel %vm807, %v1009, %v1042
        %1054 = vset.pattern.permute.xlu0 0
        %1055 = vperm.xlu0 %1054, %v951
        %v1056 = vpop.permute.xlu0 %1055
        %v1059 = vsel %vm821, %v950, 0
        %v1061 = vsel %vm807, %v1022, 0
        %v1064 = vsel %vm807, %v1025, 0
        %1066 = vmatprep.subr.mxu0 %v1046
        %1067 = vmatpush1.msra.mxu0 %v1045
        %1068 = vmatprep.subr.mxu0 %v1048
        %1069 = vmatpush1.msra.mxu0 %v1047
        %1070 = vmatprep.subr.mxu0 %v1050
        %1071 = vmatpush1.msra.mxu0 %v1049
        %1072 = vmatprep.subr.mxu0 %v1052
        %1073 = vmatpush1.msra.mxu0 %v1051
        %1074 = vmatprep.subr.mxu0 %v1064
        %1075 = vmatpush1.msra.mxu0 %v1061
        %1076 = vmatprep.subr.mxu0 0.0
        %1077 = vmatpush1.msra.mxu0 0.0
        %1078 = vmatprep.subr.mxu0 0.0
        %1079 = vmatpush1.msra.mxu0 0.0
        %1080 = vmatprep.subr.mxu0 0.0
        %1081 = vmatpush1.msra.mxu0 0.0
        %1082 = vmatprep.subr.mxu0 0.0
        %1083 = vmatpush1.msra.mxu0 0.0
        %1084 = vmatprep.subr.mxu0 0.0
        %1085 = vmatpush1.msra.mxu0 0.0
        %1086 = vmatprep.subr.mxu0 0.0
        %1087 = vmatpush1.msra.mxu0 0.0
        %1088 = vmatprep.subr.mxu0 0.0
        %1089 = vmatpush1.msra.mxu0 0.0
        %1090 = vmatprep.subr.mxu0 0.0
        %1091 = vmatpush1.msra.mxu0 0.0
        %1092 = vmatprep.subr.mxu0 0.0
        %1093 = vmatpush1.msra.mxu0 0.0
        %1094 = vmatprep.subr.mxu0 0.0
        %1095 = vmatpush1.msra.mxu0 0.0
        %1096 = vmatprep.subr.mxu0 0.0
        %1097 = vmatpush1.msra.mxu0 0.0
        %1098 = vmatprep.subr.mxu0 0.0
        %1099 = vmatpush1.msra.mxu0 0.0
        %1100 = vmatprep.subr.mxu0 0.0
        %1101 = vmatpush1.msra.mxu0 0.0
        %1102 = vmatprep.subr.mxu0 0.0
        %1103 = vmatpush1.msra.mxu0 0.0
        %1104 = vmatprep.subr.mxu0 0.0
        %1105 = vmatpush1.msra.mxu0 0.0
        %1106 = vmatprep.subr.mxu0 0.0
        %1107 = vmatpush1.msra.mxu0 0.0
        %1108 = vmatprep.subr.mxu0 0.0
        %1109 = vmatpush1.msra.mxu0 0.0
        %1110 = vmatprep.subr.mxu0 0.0
        %1111 = vmatpush1.msra.mxu0 0.0
        %1112 = vmatprep.subr.mxu0 0.0
        %1113 = vmatpush1.msra.mxu0 0.0
        %1114 = vmatprep.subr.mxu0 0.0
        %1115 = vmatpush1.msra.mxu0 0.0
        %1116 = vmatprep.subr.mxu0 0.0
        %1117 = vmatpush1.msra.mxu0 0.0
        %1118 = vmatprep.subr.mxu0 0.0
        %1119 = vmatpush1.msra.mxu0 0.0
        %1120 = vmatprep.subr.mxu0 0.0
        %1121 = vmatpush1.msra.mxu0 0.0
        %1122 = vmatprep.subr.mxu0 0.0
        %1123 = vmatpush1.msra.mxu0 0.0
        %1124 = vmatprep.subr.mxu0 0.0
        %1125 = vmatpush1.msra.mxu0 0.0
        %1126 = vmatprep.subr.mxu0 0.0
        %1127 = vmatpush1.msra.mxu0 0.0
        %1128 = vmatprep.subr.mxu0 0.0
        %1129 = vmatpush1.msra.mxu0 0.0
        %1130 = vmatprep.mubr.f32.mxu0 0.0
        %1131 = vmatmul.mubr.f32.gmra.mrb[0].mxu0 %v1059
        %v1132 = vpop.f32.mrb[0].mxu0
        %v1133 = vadd.f32 %v1056, %v1132
        %v1134 = vpop.f32.mrb[0].mxu0
        %v1135 = vadd.f32 %v1056, %v1134
        %1136 = vdwg.mxu0
        %v1137 = vsub.f32 0.0, %v1133
        %v1138 = vsub.f32 0.0, %v1135
        %v1139 = vmul.f32 %v1137, 1.442695
        %v1140 = vpow.pop %v1139
        %v1141 = vmul.f32 %v1138, 1.442695
        %v1142 = vpow.pop %v1141
        %v1143 = vadd.f32 %v1140, 1.0
        %v1144 = vadd.f32 %v1142, 1.0
        %v1145 = vrcp.pop %v1143
        %v1146 = vmul.f32 1.0, %v1145
        %v1147 = vrcp.pop %v1144
        %v1148 = vmul.f32 1.0, %v1147
        %v1149 = vmul.f32 %v1133, %v1146
        %v1150 = vmul.f32 %v1135, %v1148
        %v1151 = vadd.s32 %v686, 2
        %v1152 = vadd.s32 %v687, 2
        %vm1153 = vcmp.ge.s32.totalorder %v1151, 3
        %vm1154 = vcmp.ge.s32.totalorder %v1152, 3
        %vm1155 = vcmp.lt.s32.totalorder %v1151, 19
        %vm1156 = vcmp.lt.s32.totalorder %v1152, 19
        %vm1157 = vmand %vm1153, %vm1155
        %vm1158 = vmand %vm1154, %vm1156
        %v1159 = vsel %vm1157, 1, 0
        %v1160 = vsel %vm1158, 1, 0
        %v1161 = vlaneseq
        %v1162 = vshrl.u32 %v1161, 7
        %v1163 = vsub.s32 0, %v1162
        %v1164 = vrot.slane %v1159, %v1163
        %v1165 = vlaneseq
        %v1166 = vshrl.u32 %v1165, 7
        %v1167 = vsub.s32 0, %v1166
        %v1168 = vrot.slane %v1160, %v1167
        %vm1169 = vcmp.eq.s32.totalorder %v1164, 1
        %vm1170 = vcmp.eq.s32.totalorder %v1168, 1
        %v1171 = vsel %vm1169, %v1149, 0.0
        %v1172 = vsel %vm1170, %v1150, 0.0
        %v1173 = vsel %vm694, %v1171, 0.0
        %v1174 = vsel %vm694, %v1172, 0.0
        %v1175 = vsel %vm703, %v1171, 0.0
        %v1176 = vsel %vm703, %v1172, 0.0
        %v1177 = vld [vmem:[%s6] sm:$0xf]
        %v1178 = vld [vmem:[%s7] sm:$0xf]
        %1180 = vrot.lane.b32.xlu0 %v1174, 1
        %v1181 = vpop.permute.xlu0 %1180
        %1184 = vrot.lane.b32.xlu0 %v1173, 1
        %v1185 = vpop.permute.xlu0 %1184
        %v1186 = vsel %vm715, %v1185, %v1181
        %v1189 = vsel %vm715, %v1181, %v1185
        %1192 = vrot.lane.b32.xlu0 %v1175, 127
        %v1193 = vpop.permute.xlu0 %1192
        %1194 = vrot.lane.b32.xlu0 %v1176, 127
        %v1195 = vpop.permute.xlu0 %1194
        %v1196 = vsel %vm726, %v1193, %v1195
        %v1200 = vsel %vm726, %v1195, %v1193
        %1201 = vrot.lane.b32.xlu0 %v1173, 113
        %v1202 = vpop.permute.xlu0 %1201
        %1203 = vrot.lane.b32.xlu0 %v1174, 113
        %v1204 = vpop.permute.xlu0 %1203
        %v1205 = vsel %vm736, %v1202, %v1204
        %v1208 = vsel %vm736, %v1204, %v1202
        %1211 = vrot.lane.b32.xlu0 %v1171, 112
        %v1212 = vpop.permute.xlu0 %1211
        %1213 = vrot.lane.b32.xlu0 %v1172, 112
        %v1214 = vpop.permute.xlu0 %1213
        %v1215 = vsel %vm539, %v1212, %v1214
        %v1219 = vsel %vm539, %v1214, %v1212
        %1220 = vrot.lane.b32.xlu0 %v1175, 111
        %v1221 = vpop.permute.xlu0 %1220
        %1222 = vrot.lane.b32.xlu0 %v1176, 111
        %v1223 = vpop.permute.xlu0 %1222
        %v1224 = vsel %vm756, %v1221, %v1223
        %v1227 = vsel %vm756, %v1223, %v1221
        %1228 = vrot.lane.b32.xlu0 %v1173, 97
        %v1229 = vpop.permute.xlu0 %1228
        %1230 = vrot.lane.b32.xlu0 %v1174, 97
        %v1231 = vpop.permute.xlu0 %1230
        %v1232 = vsel %vm765, %v1229, %v1231
        %v1236 = vsel %vm765, %v1231, %v1229
        %1237 = vrot.lane.b32.xlu0 %v1171, 96
        %v1238 = vpop.permute.xlu0 %1237
        %1239 = vrot.lane.b32.xlu0 %v1172, 96
        %v1240 = vpop.permute.xlu0 %1239
        %v1241 = vsel %vm537, %v1238, %v1240
        %v1244 = vsel %vm537, %v1240, %v1238
        %1245 = vrot.lane.b32.xlu0 %v1175, 95
        %v1246 = vpop.permute.xlu0 %1245
        %1247 = vrot.lane.b32.xlu0 %v1176, 95
        %v1248 = vpop.permute.xlu0 %1247
        %v1249 = vsel %vm783, %v1246, %v1248
        %v1252 = vsel %vm783, %v1248, %v1246
        %v1253 = vrot.slane %v1171, 4
        %v1254 = vrot.slane %v1172, 4
        %v1258 = vrot.slane %v1205, 4
        %v1259 = vrot.slane %v1208, 4
        %v1263 = vrot.slane %v1224, 4
        %v1264 = vrot.slane %v1227, 4
        %v1268 = vrot.slane %v1241, 4
        %v1269 = vrot.slane %v1244, 4
        %v1272 = vsel %vm807, %v1189, %v1253
        %v1273 = vsel %vm807, %v1186, %v1254
        %v1274 = vsel %vm807, %v1196, %v1258
        %v1275 = vsel %vm807, %v1200, %v1259
        %v1276 = vsel %vm807, %v1215, %v1263
        %v1277 = vsel %vm807, %v1219, %v1264
        %v1278 = vsel %vm807, %v1232, %v1268
        %v1279 = vsel %vm807, %v1236, %v1269
        %1281 = vset.pattern.permute.xlu0 0
        %1282 = vperm.xlu0 %1281, %v1178
        %v1283 = vpop.permute.xlu0 %1282
        %v1286 = vsel %vm821, %v1177, 0
        %v1288 = vsel %vm807, %v1249, 0
        %v1291 = vsel %vm807, %v1252, 0
        %1293 = vmatprep.subr.mxu0 %v1273
        %1294 = vmatpush1.msra.mxu0 %v1272
        %1295 = vmatprep.subr.mxu0 %v1275
        %1296 = vmatpush1.msra.mxu0 %v1274
        %1297 = vmatprep.subr.mxu0 %v1277
        %1298 = vmatpush1.msra.mxu0 %v1276
        %1299 = vmatprep.subr.mxu0 %v1279
        %1300 = vmatpush1.msra.mxu0 %v1278
        %1301 = vmatprep.subr.mxu0 %v1291
        %1302 = vmatpush1.msra.mxu0 %v1288
        %1303 = vmatprep.subr.mxu0 0.0
        %1304 = vmatpush1.msra.mxu0 0.0
        %1305 = vmatprep.subr.mxu0 0.0
        %1306 = vmatpush1.msra.mxu0 0.0
        %1307 = vmatprep.subr.mxu0 0.0
        %1308 = vmatpush1.msra.mxu0 0.0
        %1309 = vmatprep.subr.mxu0 0.0
        %1310 = vmatpush1.msra.mxu0 0.0
        %1311 = vmatprep.subr.mxu0 0.0
        %1312 = vmatpush1.msra.mxu0 0.0
        %1313 = vmatprep.subr.mxu0 0.0
        %1314 = vmatpush1.msra.mxu0 0.0
        %1315 = vmatprep.subr.mxu0 0.0
        %1316 = vmatpush1.msra.mxu0 0.0
        %1317 = vmatprep.subr.mxu0 0.0
        %1318 = vmatpush1.msra.mxu0 0.0
        %1319 = vmatprep.subr.mxu0 0.0
        %1320 = vmatpush1.msra.mxu0 0.0
        %1321 = vmatprep.subr.mxu0 0.0
        %1322 = vmatpush1.msra.mxu0 0.0
        %1323 = vmatprep.subr.mxu0 0.0
        %1324 = vmatpush1.msra.mxu0 0.0
        %1325 = vmatprep.subr.mxu0 0.0
        %1326 = vmatpush1.msra.mxu0 0.0
        %1327 = vmatprep.subr.mxu0 0.0
        %1328 = vmatpush1.msra.mxu0 0.0
        %1329 = vmatprep.subr.mxu0 0.0
        %1330 = vmatpush1.msra.mxu0 0.0
        %1331 = vmatprep.subr.mxu0 0.0
        %1332 = vmatpush1.msra.mxu0 0.0
        %1333 = vmatprep.subr.mxu0 0.0
        %1334 = vmatpush1.msra.mxu0 0.0
        %1335 = vmatprep.subr.mxu0 0.0
        %1336 = vmatpush1.msra.mxu0 0.0
        %1337 = vmatprep.subr.mxu0 0.0
        %1338 = vmatpush1.msra.mxu0 0.0
        %1339 = vmatprep.subr.mxu0 0.0
        %1340 = vmatpush1.msra.mxu0 0.0
        %1341 = vmatprep.subr.mxu0 0.0
        %1342 = vmatpush1.msra.mxu0 0.0
        %1343 = vmatprep.subr.mxu0 0.0
        %1344 = vmatpush1.msra.mxu0 0.0
        %1345 = vmatprep.subr.mxu0 0.0
        %1346 = vmatpush1.msra.mxu0 0.0
        %1347 = vmatprep.subr.mxu0 0.0
        %1348 = vmatpush1.msra.mxu0 0.0
        %1349 = vmatprep.subr.mxu0 0.0
        %1350 = vmatpush1.msra.mxu0 0.0
        %1351 = vmatprep.subr.mxu0 0.0
        %1352 = vmatpush1.msra.mxu0 0.0
        %1353 = vmatprep.subr.mxu0 0.0
        %1354 = vmatpush1.msra.mxu0 0.0
        %1355 = vmatprep.subr.mxu0 0.0
        %1356 = vmatpush1.msra.mxu0 0.0
        %1357 = vmatprep.mubr.f32.mxu0 0.0
        %1358 = vmatmul.mubr.f32.gmra.mrb[0].mxu0 %v1286
        %v1359 = vpop.f32.mrb[0].mxu0
        %v1360 = vadd.f32 %v1283, %v1359
        %v1361 = vpop.f32.mrb[0].mxu0
        %1362 = vdwg.mxu0
        %v1363 = vsub.f32 0.0, %v1360
        %v1364 = vmul.f32 %v1363, 1.442695
        %v1365 = vpow.pop %v1364
        %v1366 = vadd.f32 %v1365, 1.0
        %v1367 = vrcp.pop %v1366
        %v1368 = vmul.f32 1.0, %v1367
        %v1369 = vsub.f32 %v1368, 0.5
        %1370 = vst [vmem:[%s458] sm:$0xf] %v1369
        %1371 = vrot.lane.b32.xlu0 %v460, 80
        %v1372 = vpop.permute.xlu0 %1371
        %1373 = vrot.lane.b32.xlu0 %v461, 80
        %v1374 = vpop.permute.xlu0 %1373
        %v1375 = vsel %vm535, %v1372, %v1374
        %v1377 = vadd.f32 %v1360, %v1375
        %v1378 = vmul.f32 %v1377, %v1369
        %1379 = vst [vmem:[%s444] sm:$0xf] %v1378
        %s1380 = sand.u32 %s240, 1
        %s1381 = scalar_lea.sflag [#allocation4], %s1380
        %s1382 = sand.u32 %s240, 1
        %s1383 = smul.addr %s1382, 4
        %s1384 = scalar_lea.vmem [#allocation7], %s1383
        %s1385 = sand.u32 %s34, 1
        %s1386 = scalar_lea.sflag [#allocation9], %s1385
        %s1387 = sand.u32 %s268, 1
        %s1388 = smul.addr %s1387, 4
        %s1389 = scalar_lea.vmem [#allocation8], %s1388
        %s1390 = sand.u32 %s34, 1
        %s1391 = scalar_lea.sflag [#allocation9], %s1390
        %s1392 = sand.u32 %s296, 1
        %s1393 = smul.addr %s1392, 4
        %s1394 = scalar_lea.vmem [#allocation10], %s1393
        // Predicated region
        $region61: #{tpu_custom_call.1} parent=51 // pred_check
          %p1395 = pneg %p250
        $region62: #{tpu_custom_call.1} parent=51 // pred_check_branch
          %1397 = sbr.rel (%p1395) target = $region64
        $region63: #{tpu_custom_call.1} parent=51 // pred_region
          %s1399 = ssub.s32 64, 64
          %1400 = vsyncadd %s1381, %s1399
          %s1401 = smul.addr %s38, 2
          %s1402 = sadd.s32 %s39, %s1401
          %s1403 = smul.addr %s1402, 64
          %s1404 = scalar_lea.hbm %s8, %s1403
          %s1406 = sshll.u32 %s1384, 4
          %s1407 = int_to_ptr.vmem [resolvable:$true] %s1406
          %1409 = dma.vmem_to_hbm [thread:$0]  %s1407, 64, %s1404, %s1381
        $region64: #{tpu_custom_call.1} parent=51 // pred_fallthru
          _
        // Predicated region
        $region65: #{tpu_custom_call.1} parent=51 // pred_check
          %p1410 = pneg %p278
        $region66: #{tpu_custom_call.1} parent=51 // pred_check_branch
          %1412 = sbr.rel (%p1410) target = $region68
        $region67: #{tpu_custom_call.1} parent=51 // pred_region
          %s1414 = ssub.s32 64, 64
          %1415 = vsyncadd %s1386, %s1414
          %s1416 = smul.addr %s38, 2
          %s1417 = sadd.s32 %s39, %s1416
          %s1418 = smul.addr %s1417, 64
          %s1419 = scalar_lea.hbm %s9, %s1418
          %s1421 = sshll.u32 %s1389, 4
          %s1422 = int_to_ptr.vmem [resolvable:$true] %s1421
          %1424 = dma.vmem_to_hbm [thread:$0]  %s1422, 64, %s1419, %s1386
        $region68: #{tpu_custom_call.1} parent=51 // pred_fallthru
          _
        // Predicated region
        $region69: #{tpu_custom_call.1} parent=51 // pred_check
          %p1425 = pneg %p306
        $region70: #{tpu_custom_call.1} parent=51 // pred_check_branch
          %1427 = sbr.rel (%p1425) target = $region72
        $region71: #{tpu_custom_call.1} parent=51 // pred_region
          %s1429 = ssub.s32 64, 64
          %1430 = vsyncadd %s1391, %s1429
          %s1431 = smul.addr %s38, 2
          %s1432 = sadd.s32 %s39, %s1431
          %s1433 = smul.addr %s1432, 64
          %s1434 = scalar_lea.hbm %s10, %s1433
          %s1436 = sshll.u32 %s1394, 4
          %s1437 = int_to_ptr.vmem [resolvable:$true] %s1436
          %1439 = dma.vmem_to_hbm [thread:$0]  %s1437, 64, %s1434, %s1391
        $region72: #{tpu_custom_call.1} parent=51 // pred_fallthru
          _
      $region52: #{tpu_custom_call.1} parent=5 // pred_fallthru
        _
      %p1440 = scmp.le.s32.totalorder 2, %s29
      // Predicated region
      $region73: #{tpu_custom_call.1} parent=5 // pred_check
        %p1441 = pneg %p1440
      $region74: #{tpu_custom_call.1} parent=5 // pred_check_branch
        %1443 = sbr.rel (%p1441) target = $region76
      $region75: #{tpu_custom_call.1} parent=5 // pred_region
        %s1444 = ssub.s32 %s29, 2
        // Predicated region
        $region77: #{tpu_custom_call.1} parent=75 // pred_check
          %p1445 = pneg %p256
        $region78: #{tpu_custom_call.1} parent=75 // pred_check_branch
          %1447 = sbr.rel (%p1445) target = $region80
        $region79: #{tpu_custom_call.1} parent=75 // pred_region
          %s1448 = sand.u32 %s241, 1
          %s1449 = scalar_lea.sflag [#allocation4], %s1448
          %s1450 = sand.u32 %s241, 1
          %s1451 = smul.addr %s1450, 4
          %s1452 = scalar_lea.vmem [#allocation7], %s1451
          %1453 = dma.done %s1449, 64
        $region80: #{tpu_custom_call.1} parent=75 // pred_fallthru
          _
        // Predicated region
        $region81: #{tpu_custom_call.1} parent=75 // pred_check
          %p1454 = pneg %p284
        $region82: #{tpu_custom_call.1} parent=75 // pred_check_branch
          %1456 = sbr.rel (%p1454) target = $region84
        $region83: #{tpu_custom_call.1} parent=75 // pred_region
          %s1457 = sand.u32 %s35, 1
          %s1458 = scalar_lea.sflag [#allocation9], %s1457
          %s1459 = sand.u32 %s269, 1
          %s1460 = smul.addr %s1459, 4
          %s1461 = scalar_lea.vmem [#allocation8], %s1460
          %1462 = dma.done %s1458, 64
        $region84: #{tpu_custom_call.1} parent=75 // pred_fallthru
          _
        // Predicated region
        $region85: #{tpu_custom_call.1} parent=75 // pred_check
          %p1463 = pneg %p312
        $region86: #{tpu_custom_call.1} parent=75 // pred_check_branch
          %1465 = sbr.rel (%p1463) target = $region88
        $region87: #{tpu_custom_call.1} parent=75 // pred_region
          %s1466 = sand.u32 %s35, 1
          %s1467 = scalar_lea.sflag [#allocation9], %s1466
          %s1468 = sand.u32 %s297, 1
          %s1469 = smul.addr %s1468, 4
          %s1470 = scalar_lea.vmem [#allocation10], %s1469
          %1471 = dma.done %s1467, 64
        $region88: #{tpu_custom_call.1} parent=75 // pred_fallthru
          _
      $region76: #{tpu_custom_call.1} parent=5 // pred_fallthru
        _
    $region6: #{tpu_custom_call.1} parent=1 // loop_footer
      %s33 = sadd.s32 1, %s29
    $region7: #{tpu_custom_call.1} parent=1 // loop_footer_branch
      %28 = sbr.rel target = $region3
    $region8: #{tpu_custom_call.1} parent=1 // loop_exit
      _
    %1472 = vsyncpa [#allocation3], 1
    %s1473 = scalar_lea.sflag [#allocation3], 1
    %1474 = vsyncpa %s1473, 1
    %1475 = vsyncpa [#allocation6], 1
    %s1476 = scalar_lea.sflag [#allocation6], 1
    %1477 = vsyncpa %s1476, 1
    %1478 = vsyncpa [#allocation4], 1
    %s1479 = scalar_lea.sflag [#allocation4], 1
    %1480 = vsyncpa %s1479, 1
    %1481 = vsyncpa [#allocation9], 1
    %s1482 = scalar_lea.sflag [#allocation9], 1
    %1483 = vsyncpa %s1482, 1

</llo_original>
